<compile_context>
chip_gen: v6e
topology: v6e:2x2x1
jax: 0.10.0
libtpu: 0.0.40
codegen_flags: <defaults>
</compile_context>

<pallas_src>
import jax
import jax.numpy as jnp
from jax.experimental import pallas as pl
from jax.experimental.pallas import tpu as pltpu

EPS = 1e-6


def _elu_plus_one(x):
    # torch.nn.functional.elu(x, alpha=1.0) + 1  ==  x + 1 (x > 0) else exp(x)
    return jnp.where(x > 0, x + 1.0, jnp.exp(x))


def _split_dot(x_f32, sel_bf16):
    """x @ sel with a 0/1 selector, as two native bf16 MXU passes.

    x is split as x = hi + lo with hi = bf16(x), lo = bf16(x - hi). The 0/1
    selector is exact in bf16, so the result equals (hi + lo) @ sel, i.e.
    x @ sel up to ~2^-18 relative error - well inside the 1e-4 tolerance and
    3x fewer MXU passes than Precision.HIGHEST (which made the kernel
    MXU-bound per the review).
    """
    f32 = jnp.float32
    hi = x_f32.astype(jnp.bfloat16)
    lo = (x_f32 - hi.astype(f32)).astype(jnp.bfloat16)
    return (jnp.dot(hi, sel_bf16, preferred_element_type=f32) +
            jnp.dot(lo, sel_bf16, preferred_element_type=f32))


def _rla_kernel(q_ref, k_ref, v_ref, si_ref, zi_ref, ed_ref, em_ref, emt_ref,
                v_out_ref, si_out_ref, zi_out_ref):
    # Block shapes (G = block_batch * H; rows are flattened (batch, head)):
    #   q_ref, k_ref, zi_ref : (G, D)
    #   v_ref                : (G, M)
    #   si_ref               : (G, D*M)   lane-dense state
    #   ed_ref               : (D, D*M)   bf16, e_d[d, j]  = 1 iff j // M == d
    #   em_ref               : (M, D*M)   bf16, e_m[m, j]  = 1 iff j %  M == m
    #   emt_ref              : (D*M, M)   bf16, e_m transposed
    f32 = jnp.float32

    q = q_ref[...].astype(f32)
    k = k_ref[...].astype(f32)
    v = v_ref[...].astype(f32)
    e_d = ed_ref[...]
    e_m = em_ref[...]
    e_mt = emt_ref[...]

    Q = _elu_plus_one(q)                                     # (G, D)
    K = _elu_plus_one(k)                                     # (G, D)

    zi_new = zi_ref[...].astype(f32) + K                     # (G, D)

    # Si' = Si + K (x) value, flattened along j = d*M + m.
    # Expansions K -> K[j//M], v -> v[j%M] are 2-pass bf16 selector matmuls.
    k_exp = _split_dot(K, e_d)                               # (G, DM)
    v_til = _split_dot(v, e_m)                               # (G, DM)
    si_new = si_ref[...].astype(f32) + k_exp * v_til         # (G, DM)

    # Denominator: sum_d Q * Zi'  -> (G, 1)   (lane reduce on the VPU/XLU)
    denom = jnp.sum(Q * zi_new, axis=-1, keepdims=True) + EPS

    # Numerator: sum_d Q[d] * Si'[d, m] -> (G, M), routed through the MXU.
    q_exp = _split_dot(Q, e_d)                               # (G, DM)
    num = _split_dot(q_exp * si_new, e_mt)                   # (G, M)

    # Exact divide; pl.reciprocal(..., approx=True) is too loose (~1e-4 rel)
    # for the reference tolerance.
    v_out_ref[...] = (num / denom).astype(v_out_ref.dtype)
    si_out_ref[...] = si_new.astype(si_out_ref.dtype)
    zi_out_ref[...] = zi_new.astype(zi_out_ref.dtype)


def _vmem_limit_bytes():
    """Generation-aware scoped-VMEM limit (v7x: 64 MiB/TC, v5e/v6e: 128 MiB)."""
    try:
        phys = int(pltpu.get_tpu_info().vmem_capacity_bytes)
    except Exception:
        phys = 64 << 20  # conservative (v7x-sized) when the query is unavailable
    return int(min(96 << 20, max(32 << 20, phys // 2)))


def _choose_block_batch(n, h, d, m, itemsize, vmem_budget_bytes):
    """Largest batch tile (divisor of n) whose *true* per-step VMEM footprint
    fits the budget:
      * in/out blocks are double-buffered by the Pallas pipeline (x2),
      * ~5 Si-block-sized f32 temporaries live inside the kernel
        (k_exp, v_til, q_exp, si_new, q_exp*si_new) plus small (G, D/M) ones,
      * bf16 selector constants stay resident (e_mt lane-padded to 128).
    Second-minor block dim (tb*h) must be 8/16/32-aligned per dtype (or full).
    Prefers a grid of >= 8 steps (pipeline depth + both TCs on v7x) as long as
    each step keeps a reasonably large row block.
    """
    dm = d * m
    sublane = 32 // itemsize                      # 8 (f32), 16 (bf16), 32 (i8)
    io_per_batch = 2 * itemsize * h * (2 * dm + 4 * d + 2 * m)   # x2 dbl-buffer
    tmp_per_batch = 4 * h * (5 * dm + 6 * d + 4 * m)             # f32 temps
    per_batch = io_per_batch + tmp_per_batch
    const_bytes = 2 * (d * dm + m * dm + dm * max(m, 128))       # bf16 selectors

    candidates = [tb for tb in range(1, n + 1)
                  if n % tb == 0 and ((tb * h) % sublane == 0 or tb == n)]
    fitting = [tb for tb in candidates
               if const_bytes + tb * per_batch <= vmem_budget_bytes]
    if not fitting:
        # Nothing fits the stated budget: fall back to the smallest legal tile
        # rather than silently over-allocating (review guard).
        return min(candidates)
    tb = max(fitting)
    for cand in sorted(fitting, reverse=True):
        if n // cand >= 8 and cand * h >= 64:
            tb = cand
            break
    return tb


def recurrent_linear_attention(query, key, value, state=None, block_batch=None):
    """One recurrent step of linear attention (Pallas TPU).

    query, key: (N, H, D);  value: (N, H, M)
    state: optional (Si (N, H, D, M), Zi (N, H, D)); zeros if None.
    Returns (V (N, H, M), (Si_new, Zi_new)) with the state carried in float32.
    """
    N, H, D = query.shape
    _, _, M = value.shape
    DM = D * M
    out_dtype = query.dtype
    state_dtype = jnp.float32   # f32 state avoids recurrence drift (see TODO)

    if state is None:
        si = jnp.zeros((N, H, D, M), dtype=state_dtype)
        zi = jnp.zeros((N, H, D), dtype=state_dtype)
    else:
        si, zi = state
        si = si.astype(state_dtype)
        zi = zi.astype(state_dtype)

    # Lane-dense 2-D views (contiguous merges, done by XLA outside the kernel).
    q2 = query.reshape(N * H, D)
    k2 = key.reshape(N * H, D)
    v2 = value.reshape(N * H, M)
    si2 = si.reshape(N * H, DM)
    zi2 = zi.reshape(N * H, D)

    # Constant 0/1 selection matrices, exact in bf16 (half DMA / weight width).
    eye_m = jnp.eye(M, dtype=jnp.bfloat16)
    e_d = jnp.repeat(jnp.eye(D, dtype=jnp.bfloat16), M, axis=1)   # (D, DM)
    e_m = jnp.tile(eye_m, (1, D))                                 # (M, DM)
    e_mt = jnp.tile(eye_m, (D, 1))                                # (DM, M)

    vmem_limit = _vmem_limit_bytes()
    if block_batch is None:
        itemsize = min(jnp.dtype(out_dtype).itemsize, 4)
        block_batch = _choose_block_batch(N, H, D, M, itemsize,
                                          (vmem_limit * 3) // 4)
    tb = block_batch
    assert N % tb == 0, "block_batch must divide N"
    g = tb * H
    grid = (N // tb,)

    def row_spec(cols):
        return pl.BlockSpec((g, cols), lambda n: (n, 0))

    def const_spec(rows, cols):
        return pl.BlockSpec((rows, cols), lambda n: (0, 0))

    grid_spec = pl.GridSpec(
        grid=grid,
        in_specs=[
            row_spec(D),            # query
            row_spec(D),            # key
            row_spec(M),            # value
            row_spec(DM),           # Si   (aliased -> output 1)
            row_spec(D),            # Zi   (aliased -> output 2)
            const_spec(D, DM),      # e_d
            const_spec(M, DM),      # e_m
            const_spec(DM, M),      # e_m^T
        ],
        out_specs=[
            row_spec(M),            # V
            row_spec(DM),           # Si'
            row_spec(D),            # Zi'
        ],
    )

    out_shapes = (
        jax.ShapeDtypeStruct((N * H, M), out_dtype),
        jax.ShapeDtypeStruct((N * H, DM), state_dtype),
        jax.ShapeDtypeStruct((N * H, D), state_dtype),
    )

    v2_out, si2_new, zi2_new = pl.pallas_call(
        _rla_kernel,
        out_shape=out_shapes,
        grid_spec=grid_spec,
        # State updates in place when the caller donates the state buffers.
        input_output_aliases={3: 1, 4: 2},
        compiler_params=pltpu.CompilerParams(
            dimension_semantics=("parallel",),   # batch axis -> both TCs on v7x
            vmem_limit_bytes=vmem_limit,
        ),
    )(q2, k2, v2, si2, zi2, e_d, e_m, e_mt)

    V = v2_out.reshape(N, H, M)
    si_new = si2_new.reshape(N, H, D, M)
    zi_new = zi2_new.reshape(N, H, D)
    return V, (si_new, zi_new)


def _reference(query, key, value, state=None):
    """Pure-JAX reference matching the PyTorch forward."""
    N, H, D = query.shape
    _, _, M = value.shape
    if state is None:
        si = jnp.zeros((N, H, D, M), dtype=jnp.float32)
        zi = jnp.zeros((N, H, D), dtype=jnp.float32)
    else:
        si, zi = state
    hi = jax.lax.Precision.HIGHEST
    Q = jnp.where(query > 0, query + 1.0, jnp.exp(query))
    K = jnp.where(key > 0, key + 1.0, jnp.exp(key))
    zi_new = zi + K
    si_new = si + jnp.einsum('nhd,nhm->nhdm', K, value, precision=hi)
    Z = 1.0 / (jnp.einsum('nhd,nhd->nh', Q, zi_new, precision=hi) + EPS)
    V = jnp.einsum('nhd,nhdm,nh->nhm', Q, si_new, Z, precision=hi)
    return V, (si_new, zi_new)


if __name__ == "__main__":
    # Small shapes: batch N=2, heads H=4, query_dimensions D=32, value dim M=32
    N, H, D, M = 2, 4, 32, 32
    root = jax.random.PRNGKey(0)
    kq, kk, kv = jax.random.split(root, 3)

    query = jax.random.normal(kq, (N, H, D), dtype=jnp.float32)
    key_ = jax.random.normal(kk, (N, H, D), dtype=jnp.float32)
    value = jax.random.normal(kv, (N, H, M), dtype=jnp.float32)

    # Step 1: no state (zeros); Step 2: feed the returned state back in.
    v1, state1 = recurrent_linear_attention(query, key_, value, state=None)
    v2, state2 = recurrent_linear_attention(query, key_, value, state=state1)
    jax.block_until_ready((v1, state1, v2, state2))

    # Verify against the pure-JAX reference.
    rv1, rstate1 = _reference(query, key_, value, state=None)
    rv2, rstate2 = _reference(query, key_, value, state=rstate1)

    tol = dict(atol=1e-4, rtol=1e-4)
    checks = [
        (v1, rv1), (state1[0], rstate1[0]), (state1[1], rstate1[1]),
        (v2, rv2), (state2[0], rstate2[0]), (state2[1], rstate2[1]),
    ]
    ok = all(bool(jnp.allclose(a, b, **tol)) for a, b in checks)

    if ok:
        print("KERNEL_OK")
    else:
        raise SystemExit("mismatch vs reference")
</pallas_src>

<mosaic_0001>
module attributes {stable_mosaic.version = 11 : i64} {
  func.func @_rla_kernel(%arg0: i32, %arg1: memref<8x32xf32, #tpu.memory_space<vmem>>, %arg2: memref<8x32xf32, #tpu.memory_space<vmem>>, %arg3: memref<8x32xf32, #tpu.memory_space<vmem>>, %arg4: memref<8x1024xf32, #tpu.memory_space<vmem>>, %arg5: memref<8x32xf32, #tpu.memory_space<vmem>>, %arg6: memref<32x1024xbf16, #tpu.memory_space<vmem>>, %arg7: memref<32x1024xbf16, #tpu.memory_space<vmem>>, %arg8: memref<1024x32xbf16, #tpu.memory_space<vmem>>, %arg9: memref<8x32xf32, #tpu.memory_space<vmem>>, %arg10: memref<8x1024xf32, #tpu.memory_space<vmem>>, %arg11: memref<8x32xf32, #tpu.memory_space<vmem>>) attributes {dimension_semantics = [#tpu.dimension_semantics<parallel>], iteration_bounds = array<i64: 1>, scalar_prefetch = 0 : i64, scratch_operands = 0 : i64, tpu.core_type = #tpu.core_type<tc>, window_params = [{transform_indices = @transform_0, window_bounds = array<i64: 8, 32>}, {transform_indices = @transform_1, window_bounds = array<i64: 8, 32>}, {transform_indices = @transform_2, window_bounds = array<i64: 8, 32>}, {transform_indices = @transform_3, window_bounds = array<i64: 8, 1024>}, {transform_indices = @transform_4, window_bounds = array<i64: 8, 32>}, {pipeline_mode = #tpu.pipeline_mode<synchronous>, transform_indices = @transform_5, window_bounds = array<i64: 32, 1024>}, {pipeline_mode = #tpu.pipeline_mode<synchronous>, transform_indices = @transform_6, window_bounds = array<i64: 32, 1024>}, {pipeline_mode = #tpu.pipeline_mode<synchronous>, transform_indices = @transform_7, window_bounds = array<i64: 1024, 32>}, {transform_indices = @transform_8, window_bounds = array<i64: 8, 32>}, {transform_indices = @transform_9, window_bounds = array<i64: 8, 1024>}, {transform_indices = @transform_10, window_bounds = array<i64: 8, 32>}]} {
    %c0 = arith.constant 0 : index
    %c0_0 = arith.constant 0 : index
    %0 = vector.load %arg1[%c0, %c0_0] : memref<8x32xf32, #tpu.memory_space<vmem>>, vector<8x32xf32>
    %c0_1 = arith.constant 0 : index
    %c0_2 = arith.constant 0 : index
    %1 = vector.load %arg2[%c0_1, %c0_2] : memref<8x32xf32, #tpu.memory_space<vmem>>, vector<8x32xf32>
    %c0_3 = arith.constant 0 : index
    %c0_4 = arith.constant 0 : index
    %2 = vector.load %arg3[%c0_3, %c0_4] : memref<8x32xf32, #tpu.memory_space<vmem>>, vector<8x32xf32>
    %c0_5 = arith.constant 0 : index
    %c0_6 = arith.constant 0 : index
    %3 = vector.load %arg6[%c0_5, %c0_6] : memref<32x1024xbf16, #tpu.memory_space<vmem>>, vector<32x1024xbf16>
    %c0_7 = arith.constant 0 : index
    %c0_8 = arith.constant 0 : index
    %4 = vector.load %arg7[%c0_7, %c0_8] : memref<32x1024xbf16, #tpu.memory_space<vmem>>, vector<32x1024xbf16>
    %c0_9 = arith.constant 0 : index
    %c0_10 = arith.constant 0 : index
    %5 = vector.load %arg8[%c0_9, %c0_10] : memref<1024x32xbf16, #tpu.memory_space<vmem>>, vector<1024x32xbf16>
    %cst = arith.constant 0.000000e+00 : f32
    %6 = vector.broadcast %cst : f32 to vector<8x32xf32>
    %7 = arith.cmpf ogt, %0, %6 : vector<8x32xf32>
    %cst_11 = arith.constant 1.000000e+00 : f32
    %8 = vector.broadcast %cst_11 : f32 to vector<8x32xf32>
    %9 = arith.addf %0, %8 : vector<8x32xf32>
    %10 = math.exp %0 : vector<8x32xf32>
    %11 = arith.select %7, %9, %10 : vector<8x32xi1>, vector<8x32xf32>
    %cst_12 = arith.constant 0.000000e+00 : f32
    %12 = vector.broadcast %cst_12 : f32 to vector<8x32xf32>
    %13 = arith.cmpf ogt, %1, %12 : vector<8x32xf32>
    %cst_13 = arith.constant 1.000000e+00 : f32
    %14 = vector.broadcast %cst_13 : f32 to vector<8x32xf32>
    %15 = arith.addf %1, %14 : vector<8x32xf32>
    %16 = math.exp %1 : vector<8x32xf32>
    %17 = arith.select %13, %15, %16 : vector<8x32xi1>, vector<8x32xf32>
    %c0_14 = arith.constant 0 : index
    %c0_15 = arith.constant 0 : index
    %18 = vector.load %arg5[%c0_14, %c0_15] : memref<8x32xf32, #tpu.memory_space<vmem>>, vector<8x32xf32>
    %19 = arith.addf %18, %17 : vector<8x32xf32>
    %20 = arith.truncf %17 : vector<8x32xf32> to vector<8x32xbf16>
    %21 = arith.extf %20 : vector<8x32xbf16> to vector<8x32xf32>
    %22 = arith.subf %17, %21 : vector<8x32xf32>
    %23 = arith.truncf %22 : vector<8x32xf32> to vector<8x32xbf16>
    %cst_16 = arith.constant dense<0.000000e+00> : vector<8x1024xf32>
    %24 = tpu.matmul %20, %3, %cst_16 {dimension_numbers = #tpu.dot_dimension_numbers<[1], [0], [0], [1], [0, 0, 1, 1], [], []>} : vector<8x32xbf16>, vector<32x1024xbf16>, vector<8x1024xf32> -> vector<8x1024xf32>
    %cst_17 = arith.constant dense<0.000000e+00> : vector<8x1024xf32>
    %25 = tpu.matmul %23, %3, %cst_17 {dimension_numbers = #tpu.dot_dimension_numbers<[1], [0], [0], [1], [0, 0, 1, 1], [], []>} : vector<8x32xbf16>, vector<32x1024xbf16>, vector<8x1024xf32> -> vector<8x1024xf32>
    %26 = arith.addf %24, %25 : vector<8x1024xf32>
    %27 = arith.truncf %2 : vector<8x32xf32> to vector<8x32xbf16>
    %28 = arith.extf %27 : vector<8x32xbf16> to vector<8x32xf32>
    %29 = arith.subf %2, %28 : vector<8x32xf32>
    %30 = arith.truncf %29 : vector<8x32xf32> to vector<8x32xbf16>
    %cst_18 = arith.constant dense<0.000000e+00> : vector<8x1024xf32>
    %31 = tpu.matmul %27, %4, %cst_18 {dimension_numbers = #tpu.dot_dimension_numbers<[1], [0], [0], [1], [0, 0, 1, 1], [], []>} : vector<8x32xbf16>, vector<32x1024xbf16>, vector<8x1024xf32> -> vector<8x1024xf32>
    %cst_19 = arith.constant dense<0.000000e+00> : vector<8x1024xf32>
    %32 = tpu.matmul %30, %4, %cst_19 {dimension_numbers = #tpu.dot_dimension_numbers<[1], [0], [0], [1], [0, 0, 1, 1], [], []>} : vector<8x32xbf16>, vector<32x1024xbf16>, vector<8x1024xf32> -> vector<8x1024xf32>
    %33 = arith.addf %31, %32 : vector<8x1024xf32>
    %c0_20 = arith.constant 0 : index
    %c0_21 = arith.constant 0 : index
    %34 = vector.load %arg4[%c0_20, %c0_21] : memref<8x1024xf32, #tpu.memory_space<vmem>>, vector<8x1024xf32>
    %35 = arith.mulf %26, %33 : vector<8x1024xf32>
    %36 = arith.addf %34, %35 : vector<8x1024xf32>
    %37 = arith.mulf %11, %19 : vector<8x32xf32>
    %cst_22 = arith.constant dense<0.000000e+00> : vector<8xf32>
    %38 = vector.multi_reduction <add>, %37, %cst_22 [1] : vector<8x32xf32> to vector<8xf32>
    %39 = vector.shape_cast %38 : vector<8xf32> to vector<8x1xf32>
    %cst_23 = arith.constant 9.99999997E-7 : f32
    %40 = vector.broadcast %cst_23 : f32 to vector<8x1xf32>
    %41 = arith.addf %39, %40 : vector<8x1xf32>
    %42 = arith.truncf %11 : vector<8x32xf32> to vector<8x32xbf16>
    %43 = arith.extf %42 : vector<8x32xbf16> to vector<8x32xf32>
    %44 = arith.subf %11, %43 : vector<8x32xf32>
    %45 = arith.truncf %44 : vector<8x32xf32> to vector<8x32xbf16>
    %cst_24 = arith.constant dense<0.000000e+00> : vector<8x1024xf32>
    %46 = tpu.matmul %42, %3, %cst_24 {dimension_numbers = #tpu.dot_dimension_numbers<[1], [0], [0], [1], [0, 0, 1, 1], [], []>} : vector<8x32xbf16>, vector<32x1024xbf16>, vector<8x1024xf32> -> vector<8x1024xf32>
    %cst_25 = arith.constant dense<0.000000e+00> : vector<8x1024xf32>
    %47 = tpu.matmul %45, %3, %cst_25 {dimension_numbers = #tpu.dot_dimension_numbers<[1], [0], [0], [1], [0, 0, 1, 1], [], []>} : vector<8x32xbf16>, vector<32x1024xbf16>, vector<8x1024xf32> -> vector<8x1024xf32>
    %48 = arith.addf %46, %47 : vector<8x1024xf32>
    %49 = arith.mulf %48, %36 : vector<8x1024xf32>
    %50 = arith.truncf %49 : vector<8x1024xf32> to vector<8x1024xbf16>
    %51 = arith.extf %50 : vector<8x1024xbf16> to vector<8x1024xf32>
    %52 = arith.subf %49, %51 : vector<8x1024xf32>
    %53 = arith.truncf %52 : vector<8x1024xf32> to vector<8x1024xbf16>
    %cst_26 = arith.constant dense<0.000000e+00> : vector<8x32xf32>
    %54 = tpu.matmul %50, %5, %cst_26 {dimension_numbers = #tpu.dot_dimension_numbers<[1], [0], [0], [1], [0, 0, 1, 1], [], []>} : vector<8x1024xbf16>, vector<1024x32xbf16>, vector<8x32xf32> -> vector<8x32xf32>
    %cst_27 = arith.constant dense<0.000000e+00> : vector<8x32xf32>
    %55 = tpu.matmul %53, %5, %cst_27 {dimension_numbers = #tpu.dot_dimension_numbers<[1], [0], [0], [1], [0, 0, 1, 1], [], []>} : vector<8x1024xbf16>, vector<1024x32xbf16>, vector<8x32xf32> -> vector<8x32xf32>
    %56 = arith.addf %54, %55 : vector<8x32xf32>
    %57 = vector.broadcast %41 : vector<8x1xf32> to vector<8x32xf32>
    %58 = arith.divf %56, %57 : vector<8x32xf32>
    %c0_28 = arith.constant 0 : index
    %c0_29 = arith.constant 0 : index
    %59 = vector.load %arg9[%c0_28, %c0_29] : memref<8x32xf32, #tpu.memory_space<vmem>>, vector<8x32xf32>
    tpu.vector_store %arg9[%c0_28, %c0_29], %58 {strides = array<i32>} : memref<8x32xf32, #tpu.memory_space<vmem>>, vector<8x32xf32>,
    %c0_30 = arith.constant 0 : index
    %c0_31 = arith.constant 0 : index
    %60 = vector.load %arg10[%c0_30, %c0_31] : memref<8x1024xf32, #tpu.memory_space<vmem>>, vector<8x1024xf32>
    tpu.vector_store %arg10[%c0_30, %c0_31], %36 {strides = array<i32>} : memref<8x1024xf32, #tpu.memory_space<vmem>>, vector<8x1024xf32>,
    %c0_32 = arith.constant 0 : index
    %c0_33 = arith.constant 0 : index
    %61 = vector.load %arg11[%c0_32, %c0_33] : memref<8x32xf32, #tpu.memory_space<vmem>>, vector<8x32xf32>
    tpu.vector_store %arg11[%c0_32, %c0_33], %19 {strides = array<i32>} : memref<8x32xf32, #tpu.memory_space<vmem>>, vector<8x32xf32>,
    return
  }
  func.func @transform_0(%arg0: i32) -> (i32, i32) {
    %c0_i32 = arith.constant 0 : i32
    %c0_i32_0 = arith.constant 0 : i32
    return %arg0, %c0_i32 : i32, i32
  }
  func.func @transform_1(%arg0: i32) -> (i32, i32) {
    %c0_i32 = arith.constant 0 : i32
    %c0_i32_0 = arith.constant 0 : i32
    return %arg0, %c0_i32 : i32, i32
  }
  func.func @transform_2(%arg0: i32) -> (i32, i32) {
    %c0_i32 = arith.constant 0 : i32
    %c0_i32_0 = arith.constant 0 : i32
    return %arg0, %c0_i32 : i32, i32
  }
  func.func @transform_3(%arg0: i32) -> (i32, i32) {
    %c0_i32 = arith.constant 0 : i32
    %c0_i32_0 = arith.constant 0 : i32
    return %arg0, %c0_i32 : i32, i32
  }
  func.func @transform_4(%arg0: i32) -> (i32, i32) {
    %c0_i32 = arith.constant 0 : i32
    %c0_i32_0 = arith.constant 0 : i32
    return %arg0, %c0_i32 : i32, i32
  }
  func.func @transform_5(%arg0: i32) -> (i32, i32) {
    %c0_i32 = arith.constant 0 : i32
    %c0_i32_0 = arith.constant 0 : i32
    %c0_i32_1 = arith.constant 0 : i32
    return %c0_i32, %c0_i32_0 : i32, i32
  }
  func.func @transform_6(%arg0: i32) -> (i32, i32) {
    %c0_i32 = arith.constant 0 : i32
    %c0_i32_0 = arith.constant 0 : i32
    %c0_i32_1 = arith.constant 0 : i32
    return %c0_i32, %c0_i32_0 : i32, i32
  }
  func.func @transform_7(%arg0: i32) -> (i32, i32) {
    %c0_i32 = arith.constant 0 : i32
    %c0_i32_0 = arith.constant 0 : i32
    %c0_i32_1 = arith.constant 0 : i32
    return %c0_i32, %c0_i32_0 : i32, i32
  }
  func.func @transform_8(%arg0: i32) -> (i32, i32) {
    %c0_i32 = arith.constant 0 : i32
    %c0_i32_0 = arith.constant 0 : i32
    return %arg0, %c0_i32 : i32, i32
  }
  func.func @transform_9(%arg0: i32) -> (i32, i32) {
    %c0_i32 = arith.constant 0 : i32
    %c0_i32_0 = arith.constant 0 : i32
    return %arg0, %c0_i32 : i32, i32
  }
  func.func @transform_10(%arg0: i32) -> (i32, i32) {
    %c0_i32 = arith.constant 0 : i32
    %c0_i32_0 = arith.constant 0 : i32
    return %arg0, %c0_i32 : i32, i32
  }
}

</mosaic_0001>

<llo_original>
// kernel: tpu_custom_call.1
$region0: #{tpu_custom_call.1}
  #allocation0 [shape = 'u32[]', space=smem, size = 0x4, offset = 0x4, fixed_abs, tag = 'smem constant byte address 0x4 - core index']
  #allocation1 [shape = 'u32[144,128]{1,0:T(1,128)}', space=vmem, size = 0x12000, scoped, tag = 'internal scratch']
  %s0 = inlined_call_operand.vmem [shape: f32[8,32], index: 0, kind: input, shape index: {}]
  %s1 = inlined_call_operand.vmem [shape: f32[8,32], index: 1, kind: input, shape index: {}]
  %s2 = inlined_call_operand.vmem [shape: f32[8,32], index: 2, kind: input, shape index: {}]
  %s3 = inlined_call_operand.hbm [shape: f32[8,1024], index: 3, kind: input, shape index: {}, may-alias: {3,9}]
  %s4 = inlined_call_operand.hbm [shape: f32[8,32], index: 4, kind: input, shape index: {}, may-alias: {4,10}]
  %s5 = inlined_call_operand.vmem [shape: bf16[32,1024], index: 5, kind: input, shape index: {}]
  %s6 = inlined_call_operand.vmem [shape: bf16[32,1024], index: 6, kind: input, shape index: {}]
  %s7 = inlined_call_operand.vmem [shape: bf16[1024,32], index: 7, kind: input, shape index: {}]
  %s8 = inlined_call_operand.hbm [shape: f32[8,32], index: 8, kind: output, shape index: {0}]
  %s9 = inlined_call_operand.hbm [shape: f32[8,1024], index: 9, kind: output, shape index: {1}, may-alias: {3,9}]
  %s10 = inlined_call_operand.hbm [shape: f32[8,32], index: 10, kind: output, shape index: {2}, may-alias: {4,10}]
  %11 = xla_tuple %s8, %s9, %s10
  %s12 = sld [smem:[#allocation0]]
  $region66: #{tpu_custom_call.1} parent=0
    _
  %s14 = ssub.s32 1, %s12
  %s15 = scalar_select 0, %s14, %s12
  $region1: #{tpu_custom_call.1} parent=0
    #allocation2 [shape = 'u8[32768]{0}', space=vmem, size = 0x8000, scoped, tag = 'input window, operand 3, single buffered']
    #allocation3 [shape = 's32[1]{0}', space=sflag, size = 0x4, scoped, tag = 'scoped memory for tpu_custom_call.1']
    #allocation4 [shape = 's32[1]{0}', space=sflag, size = 0x4, scoped, tag = 'scoped memory for tpu_custom_call.1']
    #allocation5 [shape = 'u8[4096]{0}', space=vmem, size = 0x1000, scoped, tag = 'input window, operand 4, single buffered']
    #allocation6 [shape = 's32[1]{0}', space=sflag, size = 0x4, scoped, tag = 'scoped memory for tpu_custom_call.1']
    #allocation7 [shape = 'u8[4096]{0}', space=vmem, size = 0x1000, scoped, tag = 'output window, operand 0, single buffered']
    #allocation8 [shape = 'u8[32768]{0}', space=vmem, size = 0x8000, scoped, tag = 'output window, operand 1, single buffered']
    #allocation9 [shape = 's32[1]{0}', space=sflag, size = 0x4, scoped, tag = 'scoped memory for tpu_custom_call.1']
    #allocation10 [shape = 'u8[4096]{0}', space=vmem, size = 0x1000, scoped, tag = 'output window, operand 2, single buffered']
    %16 = vsyncpa [#allocation3], 0
    %17 = vsyncpa [#allocation6], 0
    %18 = vsyncpa [#allocation4], 0
    %19 = vsyncpa [#allocation9], 0
    // Predicated region
    $region2: #{tpu_custom_call.1} parent=1 // pred_check
      _
    $region3: #{tpu_custom_call.1} parent=1 // pred_check_branch
      %21 = sbr.rel (0) target = $region5
    $region4: #{tpu_custom_call.1} parent=1 // pred_region
      _
    $region5: #{tpu_custom_call.1} parent=1 // pred_fallthru
      _
    // Predicated region
    $region6: #{tpu_custom_call.1} parent=1 // pred_check
      _
    $region7: #{tpu_custom_call.1} parent=1 // pred_check_branch
      %23 = sbr.rel (0) target = $region9
    $region8: #{tpu_custom_call.1} parent=1 // pred_region
      _
    $region9: #{tpu_custom_call.1} parent=1 // pred_fallthru
      _
    // Predicated region
    $region10: #{tpu_custom_call.1} parent=1 // pred_check
      _
    $region11: #{tpu_custom_call.1} parent=1 // pred_check_branch
      %25 = sbr.rel (0) target = $region13
    $region12: #{tpu_custom_call.1} parent=1 // pred_region
      _
    $region13: #{tpu_custom_call.1} parent=1 // pred_fallthru
      _
    // Predicated region
    $region14: #{tpu_custom_call.1} parent=1 // pred_check
      _
    $region15: #{tpu_custom_call.1} parent=1 // pred_check_branch
      %27 = sbr.rel (0) target = $region17
    $region16: #{tpu_custom_call.1} parent=1 // pred_region
      %s29 = ssub.s32 1024, 1024
      %30 = vsyncadd [#allocation3], %s29
      %s32 = sshll.u32 [#allocation2], 4
      %s33 = int_to_ptr.vmem [resolvable:$true] %s32
      %35 = dma.hbm_to_vmem [thread:$0]  %s3, 1024, %s33, [#allocation3]
    $region17: #{tpu_custom_call.1} parent=1 // pred_fallthru
      _
    // Predicated region
    $region18: #{tpu_custom_call.1} parent=1 // pred_check
      _
    $region19: #{tpu_custom_call.1} parent=1 // pred_check_branch
      %37 = sbr.rel (0) target = $region21
    $region20: #{tpu_custom_call.1} parent=1 // pred_region
      %s39 = ssub.s32 128, 128
      %40 = vsyncadd [#allocation6], %s39
      %s42 = sshll.u32 [#allocation5], 4
      %s43 = int_to_ptr.vmem [resolvable:$true] %s42
      %45 = dma.hbm_to_vmem [thread:$0]  %s4, 128, %s43, [#allocation6]
    $region21: #{tpu_custom_call.1} parent=1 // pred_fallthru
      _
    // Predicated region
    $region22: #{tpu_custom_call.1} parent=1 // pred_check
      _
    $region23: #{tpu_custom_call.1} parent=1 // pred_check_branch
      %47 = sbr.rel (0) target = $region25
    $region24: #{tpu_custom_call.1} parent=1 // pred_region
      _
    $region25: #{tpu_custom_call.1} parent=1 // pred_fallthru
      _
    // Predicated region
    $region26: #{tpu_custom_call.1} parent=1 // pred_check
      _
    $region27: #{tpu_custom_call.1} parent=1 // pred_check_branch
      %49 = sbr.rel (0) target = $region29
    $region28: #{tpu_custom_call.1} parent=1 // pred_region
      _
    $region29: #{tpu_custom_call.1} parent=1 // pred_fallthru
      _
    // Predicated region
    $region30: #{tpu_custom_call.1} parent=1 // pred_check
      _
    $region31: #{tpu_custom_call.1} parent=1 // pred_check_branch
      %51 = sbr.rel (0) target = $region33
    $region32: #{tpu_custom_call.1} parent=1 // pred_region
      _
    $region33: #{tpu_custom_call.1} parent=1 // pred_fallthru
      _
    // Predicated region
    $region34: #{tpu_custom_call.1} parent=1 // pred_check
      _
    $region35: #{tpu_custom_call.1} parent=1 // pred_check_branch
      %53 = sbr.rel (0) target = $region37
    $region36: #{tpu_custom_call.1} parent=1 // pred_region
      %54 = dma.done [#allocation3], 1024
    $region37: #{tpu_custom_call.1} parent=1 // pred_fallthru
      _
    // Predicated region
    $region38: #{tpu_custom_call.1} parent=1 // pred_check
      _
    $region39: #{tpu_custom_call.1} parent=1 // pred_check_branch
      %56 = sbr.rel (0) target = $region41
    $region40: #{tpu_custom_call.1} parent=1 // pred_region
      %57 = dma.done [#allocation6], 128
    $region41: #{tpu_custom_call.1} parent=1 // pred_fallthru
      _
    %v59 = vld [vmem:[%s0] sm:$0xff]
    %v60 = vld [vmem:[%s1] sm:$0xff]
    %v61 = vld [vmem:[%s2] sm:$0xff]
    %v62 = vld [vmem:[%s5] sm:$0xff]
    %v63 = vld [vmem:[%s5 + $0x8] sm:$0xff]
    %v64 = vld [vmem:[%s5 + $0x10] sm:$0xff]
    %v65 = vld [vmem:[%s5 + $0x18] sm:$0xff]
    %v66 = vld [vmem:[%s5 + $0x20] sm:$0xff]
    %v67 = vld [vmem:[%s5 + $0x28] sm:$0xff]
    %v68 = vld [vmem:[%s5 + $0x30] sm:$0xff]
    %v69 = vld [vmem:[%s5 + $0x38] sm:$0xff]
    %v70 = vld [vmem:[%s5 + $0x40] sm:$0xff]
    %v71 = vld [vmem:[%s5 + $0x48] sm:$0xff]
    %v72 = vld [vmem:[%s5 + $0x50] sm:$0xff]
    %v73 = vld [vmem:[%s5 + $0x58] sm:$0xff]
    %v74 = vld [vmem:[%s5 + $0x60] sm:$0xff]
    %v75 = vld [vmem:[%s5 + $0x68] sm:$0xff]
    %v76 = vld [vmem:[%s5 + $0x70] sm:$0xff]
    %v77 = vld [vmem:[%s5 + $0x78] sm:$0xff]
    %v78 = vld [vmem:[%s6] sm:$0xff]
    %v79 = vld [vmem:[%s6 + $0x8] sm:$0xff]
    %v80 = vld [vmem:[%s6 + $0x10] sm:$0xff]
    %v81 = vld [vmem:[%s6 + $0x18] sm:$0xff]
    %v82 = vld [vmem:[%s6 + $0x20] sm:$0xff]
    %v83 = vld [vmem:[%s6 + $0x28] sm:$0xff]
    %v84 = vld [vmem:[%s6 + $0x30] sm:$0xff]
    %v85 = vld [vmem:[%s6 + $0x38] sm:$0xff]
    %v86 = vld [vmem:[%s6 + $0x40] sm:$0xff]
    %v87 = vld [vmem:[%s6 + $0x48] sm:$0xff]
    %v88 = vld [vmem:[%s6 + $0x50] sm:$0xff]
    %v89 = vld [vmem:[%s6 + $0x58] sm:$0xff]
    %v90 = vld [vmem:[%s6 + $0x60] sm:$0xff]
    %v91 = vld [vmem:[%s6 + $0x68] sm:$0xff]
    %v92 = vld [vmem:[%s6 + $0x70] sm:$0xff]
    %v93 = vld [vmem:[%s6 + $0x78] sm:$0xff]
    %v94 = vld [vmem:[%s7] sm:$0xf]
    %v95 = vld [vmem:[%s7 + $0x4] sm:$0xf]
    %v96 = vld [vmem:[%s7 + $0x8] sm:$0xf]
    %v97 = vld [vmem:[%s7 + $0xc] sm:$0xf]
    %v98 = vld [vmem:[%s7 + $0x10] sm:$0xf]
    %v99 = vld [vmem:[%s7 + $0x14] sm:$0xf]
    %v100 = vld [vmem:[%s7 + $0x18] sm:$0xf]
    %v101 = vld [vmem:[%s7 + $0x1c] sm:$0xf]
    %v102 = vld [vmem:[%s7 + $0x20] sm:$0xf]
    %v103 = vld [vmem:[%s7 + $0x24] sm:$0xf]
    %v104 = vld [vmem:[%s7 + $0x28] sm:$0xf]
    %v105 = vld [vmem:[%s7 + $0x2c] sm:$0xf]
    %v106 = vld [vmem:[%s7 + $0x30] sm:$0xf]
    %v107 = vld [vmem:[%s7 + $0x34] sm:$0xf]
    %v108 = vld [vmem:[%s7 + $0x38] sm:$0xf]
    %v109 = vld [vmem:[%s7 + $0x3c] sm:$0xf]
    %v110 = vld [vmem:[%s7 + $0x40] sm:$0xf]
    %v111 = vld [vmem:[%s7 + $0x44] sm:$0xf]
    %v112 = vld [vmem:[%s7 + $0x48] sm:$0xf]
    %v113 = vld [vmem:[%s7 + $0x4c] sm:$0xf]
    %v114 = vld [vmem:[%s7 + $0x50] sm:$0xf]
    %v115 = vld [vmem:[%s7 + $0x54] sm:$0xf]
    %v116 = vld [vmem:[%s7 + $0x58] sm:$0xf]
    %v117 = vld [vmem:[%s7 + $0x5c] sm:$0xf]
    %v118 = vld [vmem:[%s7 + $0x60] sm:$0xf]
    %v119 = vld [vmem:[%s7 + $0x64] sm:$0xf]
    %v120 = vld [vmem:[%s7 + $0x68] sm:$0xf]
    %v121 = vld [vmem:[%s7 + $0x6c] sm:$0xf]
    %v122 = vld [vmem:[%s7 + $0x70] sm:$0xf]
    %v123 = vld [vmem:[%s7 + $0x74] sm:$0xf]
    %v124 = vld [vmem:[%s7 + $0x78] sm:$0xf]
    %v125 = vld [vmem:[%s7 + $0x7c] sm:$0xf]
    %v126 = vld [vmem:[%s7 + $0x80] sm:$0xf]
    %v127 = vld [vmem:[%s7 + $0x84] sm:$0xf]
    %v128 = vld [vmem:[%s7 + $0x88] sm:$0xf]
    %v129 = vld [vmem:[%s7 + $0x8c] sm:$0xf]
    %v130 = vld [vmem:[%s7 + $0x90] sm:$0xf]
    %v131 = vld [vmem:[%s7 + $0x94] sm:$0xf]
    %v132 = vld [vmem:[%s7 + $0x98] sm:$0xf]
    %v133 = vld [vmem:[%s7 + $0x9c] sm:$0xf]
    %v134 = vld [vmem:[%s7 + $0xa0] sm:$0xf]
    %v135 = vld [vmem:[%s7 + $0xa4] sm:$0xf]
    %v136 = vld [vmem:[%s7 + $0xa8] sm:$0xf]
    %v137 = vld [vmem:[%s7 + $0xac] sm:$0xf]
    %v138 = vld [vmem:[%s7 + $0xb0] sm:$0xf]
    %v139 = vld [vmem:[%s7 + $0xb4] sm:$0xf]
    %v140 = vld [vmem:[%s7 + $0xb8] sm:$0xf]
    %v141 = vld [vmem:[%s7 + $0xbc] sm:$0xf]
    %v142 = vld [vmem:[%s7 + $0xc0] sm:$0xf]
    %v143 = vld [vmem:[%s7 + $0xc4] sm:$0xf]
    %v144 = vld [vmem:[%s7 + $0xc8] sm:$0xf]
    %v145 = vld [vmem:[%s7 + $0xcc] sm:$0xf]
    %v146 = vld [vmem:[%s7 + $0xd0] sm:$0xf]
    %v147 = vld [vmem:[%s7 + $0xd4] sm:$0xf]
    %v148 = vld [vmem:[%s7 + $0xd8] sm:$0xf]
    %v149 = vld [vmem:[%s7 + $0xdc] sm:$0xf]
    %v150 = vld [vmem:[%s7 + $0xe0] sm:$0xf]
    %v151 = vld [vmem:[%s7 + $0xe4] sm:$0xf]
    %v152 = vld [vmem:[%s7 + $0xe8] sm:$0xf]
    %v153 = vld [vmem:[%s7 + $0xec] sm:$0xf]
    %v154 = vld [vmem:[%s7 + $0xf0] sm:$0xf]
    %v155 = vld [vmem:[%s7 + $0xf4] sm:$0xf]
    %v156 = vld [vmem:[%s7 + $0xf8] sm:$0xf]
    %v157 = vld [vmem:[%s7 + $0xfc] sm:$0xf]
    %v158 = vld [vmem:[%s7 + $0x100] sm:$0xf]
    %v159 = vld [vmem:[%s7 + $0x104] sm:$0xf]
    %v160 = vld [vmem:[%s7 + $0x108] sm:$0xf]
    %v161 = vld [vmem:[%s7 + $0x10c] sm:$0xf]
    %v162 = vld [vmem:[%s7 + $0x110] sm:$0xf]
    %v163 = vld [vmem:[%s7 + $0x114] sm:$0xf]
    %v164 = vld [vmem:[%s7 + $0x118] sm:$0xf]
    %v165 = vld [vmem:[%s7 + $0x11c] sm:$0xf]
    %v166 = vld [vmem:[%s7 + $0x120] sm:$0xf]
    %v167 = vld [vmem:[%s7 + $0x124] sm:$0xf]
    %v168 = vld [vmem:[%s7 + $0x128] sm:$0xf]
    %v169 = vld [vmem:[%s7 + $0x12c] sm:$0xf]
    %v170 = vld [vmem:[%s7 + $0x130] sm:$0xf]
    %v171 = vld [vmem:[%s7 + $0x134] sm:$0xf]
    %v172 = vld [vmem:[%s7 + $0x138] sm:$0xf]
    %v173 = vld [vmem:[%s7 + $0x13c] sm:$0xf]
    %v174 = vld [vmem:[%s7 + $0x140] sm:$0xf]
    %v175 = vld [vmem:[%s7 + $0x144] sm:$0xf]
    %v176 = vld [vmem:[%s7 + $0x148] sm:$0xf]
    %v177 = vld [vmem:[%s7 + $0x14c] sm:$0xf]
    %v178 = vld [vmem:[%s7 + $0x150] sm:$0xf]
    %v179 = vld [vmem:[%s7 + $0x154] sm:$0xf]
    %v180 = vld [vmem:[%s7 + $0x158] sm:$0xf]
    %v181 = vld [vmem:[%s7 + $0x15c] sm:$0xf]
    %v182 = vld [vmem:[%s7 + $0x160] sm:$0xf]
    %v183 = vld [vmem:[%s7 + $0x164] sm:$0xf]
    %v184 = vld [vmem:[%s7 + $0x168] sm:$0xf]
    %v185 = vld [vmem:[%s7 + $0x16c] sm:$0xf]
    %v186 = vld [vmem:[%s7 + $0x170] sm:$0xf]
    %v187 = vld [vmem:[%s7 + $0x174] sm:$0xf]
    %v188 = vld [vmem:[%s7 + $0x178] sm:$0xf]
    %v189 = vld [vmem:[%s7 + $0x17c] sm:$0xf]
    %v190 = vld [vmem:[%s7 + $0x180] sm:$0xf]
    %v191 = vld [vmem:[%s7 + $0x184] sm:$0xf]
    %v192 = vld [vmem:[%s7 + $0x188] sm:$0xf]
    %v193 = vld [vmem:[%s7 + $0x18c] sm:$0xf]
    %v194 = vld [vmem:[%s7 + $0x190] sm:$0xf]
    %v195 = vld [vmem:[%s7 + $0x194] sm:$0xf]
    %v196 = vld [vmem:[%s7 + $0x198] sm:$0xf]
    %v197 = vld [vmem:[%s7 + $0x19c] sm:$0xf]
    %v198 = vld [vmem:[%s7 + $0x1a0] sm:$0xf]
    %v199 = vld [vmem:[%s7 + $0x1a4] sm:$0xf]
    %v200 = vld [vmem:[%s7 + $0x1a8] sm:$0xf]
    %v201 = vld [vmem:[%s7 + $0x1ac] sm:$0xf]
    %v202 = vld [vmem:[%s7 + $0x1b0] sm:$0xf]
    %v203 = vld [vmem:[%s7 + $0x1b4] sm:$0xf]
    %v204 = vld [vmem:[%s7 + $0x1b8] sm:$0xf]
    %v205 = vld [vmem:[%s7 + $0x1bc] sm:$0xf]
    %v206 = vld [vmem:[%s7 + $0x1c0] sm:$0xf]
    %v207 = vld [vmem:[%s7 + $0x1c4] sm:$0xf]
    %v208 = vld [vmem:[%s7 + $0x1c8] sm:$0xf]
    %v209 = vld [vmem:[%s7 + $0x1cc] sm:$0xf]
    %v210 = vld [vmem:[%s7 + $0x1d0] sm:$0xf]
    %v211 = vld [vmem:[%s7 + $0x1d4] sm:$0xf]
    %v212 = vld [vmem:[%s7 + $0x1d8] sm:$0xf]
    %v213 = vld [vmem:[%s7 + $0x1dc] sm:$0xf]
    %v214 = vld [vmem:[%s7 + $0x1e0] sm:$0xf]
    %v215 = vld [vmem:[%s7 + $0x1e4] sm:$0xf]
    %v216 = vld [vmem:[%s7 + $0x1e8] sm:$0xf]
    %v217 = vld [vmem:[%s7 + $0x1ec] sm:$0xf]
    %v218 = vld [vmem:[%s7 + $0x1f0] sm:$0xf]
    %v219 = vld [vmem:[%s7 + $0x1f4] sm:$0xf]
    %v220 = vld [vmem:[%s7 + $0x1f8] sm:$0xf]
    %v221 = vld [vmem:[%s7 + $0x1fc] sm:$0xf]
    %vm222 = vcmp.gt.f32.partialorder %v59, 0.0
    %v223 = vadd.f32 %v59, 1.0
    %v224 = vmul.f32 %v59, 1.442695
    %v225 = vpow.pop %v224
    %v226 = vsel %vm222, %v223, %v225
    %vm227 = vcmp.gt.f32.partialorder %v60, 0.0
    %v228 = vadd.f32 %v60, 1.0
    %v229 = vmul.f32 %v60, 1.442695
    %v230 = vpow.pop %v229
    %v231 = vsel %vm227, %v228, %v230
    %v232 = vld [vmem:[#allocation5] sm:$0xff]
    %v233 = vadd.f32 %v232, %v231
    %v234 = vpack.c.bf16 %v231, %v231
    %v235 = vunpack.c.l.bf16 %v234
    %v236 = vsub.f32 %v231, %v235
    %v237 = vpack.c.bf16 %v236, %v236
    %v254 = vunpack.c.l.b16 %v62
    %v255 = vunpack.c.h.b16 %v62
    %v256 = vunpack.c.l.b16 %v63
    %v257 = vunpack.c.h.b16 %v63
    %v258 = vunpack.c.l.b16 %v64
    %v259 = vunpack.c.h.b16 %v64
    %v260 = vunpack.c.l.b16 %v65
    %v261 = vunpack.c.h.b16 %v65
    %v262 = vunpack.c.l.b16 %v66
    %v263 = vunpack.c.h.b16 %v66
    %v264 = vunpack.c.l.b16 %v67
    %v265 = vunpack.c.h.b16 %v67
    %v266 = vunpack.c.l.b16 %v68
    %v267 = vunpack.c.h.b16 %v68
    %v268 = vunpack.c.l.b16 %v69
    %v269 = vunpack.c.h.b16 %v69
    %v270 = vunpack.c.l.b16 %v70
    %v271 = vunpack.c.h.b16 %v70
    %v272 = vunpack.c.l.b16 %v71
    %v273 = vunpack.c.h.b16 %v71
    %v274 = vunpack.c.l.b16 %v72
    %v275 = vunpack.c.h.b16 %v72
    %v276 = vunpack.c.l.b16 %v73
    %v277 = vunpack.c.h.b16 %v73
    %v278 = vunpack.c.l.b16 %v74
    %v279 = vunpack.c.h.b16 %v74
    %v280 = vunpack.c.l.b16 %v75
    %v281 = vunpack.c.h.b16 %v75
    %v282 = vunpack.c.l.b16 %v76
    %v283 = vunpack.c.h.b16 %v76
    %v284 = vunpack.c.l.b16 %v77
    %v285 = vunpack.c.h.b16 %v77
    %v286 = vpack.c.b16 %v262, %v254
    %v287 = vpack.c.b16 %v263, %v255
    %v288 = vpack.c.b16 %v264, %v256
    %v289 = vpack.c.b16 %v265, %v257
    %v290 = vpack.c.b16 %v266, %v258
    %v291 = vpack.c.b16 %v267, %v259
    %v292 = vpack.c.b16 %v268, %v260
    %v293 = vpack.c.b16 %v269, %v261
    %v294 = vpack.c.b16 %v278, %v270
    %v295 = vpack.c.b16 %v279, %v271
    %v296 = vpack.c.b16 %v280, %v272
    %v297 = vpack.c.b16 %v281, %v273
    %v298 = vpack.c.b16 %v282, %v274
    %v299 = vpack.c.b16 %v283, %v275
    %v300 = vpack.c.b16 %v284, %v276
    %v301 = vpack.c.b16 %v285, %v277
    %vm318 = vcmask 261120
    %v320 = vsel %vm318, %v237, 0
    %322 = vmatprep.subr.bf16.mxu0 0
    %323 = vmatpush1.bf16.msra.mxu0 0
    %324 = vmatprep.subr.bf16.mxu0 0
    %325 = vmatpush1.bf16.msra.mxu0 0
    %326 = vmatprep.subr.bf16.mxu0 0
    %327 = vmatpush1.bf16.msra.mxu0 0
    %328 = vmatprep.subr.bf16.mxu0 0
    %329 = vmatpush1.bf16.msra.mxu0 0
    %330 = vmatprep.subr.bf16.mxu0 0
    %331 = vmatpush1.bf16.msra.mxu0 0
    %332 = vmatprep.subr.bf16.mxu0 0
    %333 = vmatpush1.bf16.msra.mxu0 0
    %334 = vmatprep.subr.bf16.mxu0 %v295
    %335 = vmatpush1.bf16.msra.mxu0 %v294
    %336 = vmatprep.subr.bf16.mxu0 %v287
    %337 = vmatpush1.bf16.msra.mxu0 %v286
    %338 = vmatprep.subr.bf16.mxu0 0
    %339 = vmatpush2.bf16.msra.mxu0 0
    %340 = vmatprep.subr.bf16.mxu0 0
    %341 = vmatpush2.bf16.msra.mxu0 0
    %342 = vmatprep.subr.bf16.mxu0 0
    %343 = vmatpush2.bf16.msra.mxu0 0
    %344 = vmatprep.subr.bf16.mxu0 0
    %345 = vmatpush2.bf16.msra.mxu0 0
    %346 = vmatprep.subr.bf16.mxu0 0
    %347 = vmatpush2.bf16.msra.mxu0 0
    %348 = vmatprep.subr.bf16.mxu0 0
    %349 = vmatpush2.bf16.msra.mxu0 0
    %350 = vmatprep.subr.bf16.mxu0 0
    %351 = vmatpush2.bf16.msra.mxu0 0
    %352 = vmatprep.subr.bf16.mxu0 0
    %353 = vmatpush2.bf16.msra.mxu0 0
    %354 = vmatprep.mubr.bf16.mxu0 0
    %355 = vmatmul.mubr.bf16.gmra.mxu0 %v320
    %v356 = vpop.f32.mrf.mxu0
    %v357 = vadd.f32 0.0, %v356
    %v358 = vpop.f32.mrf.mxu0
    %v359 = vadd.f32 0.0, %v358
    %v360 = vpop.f32.mrf.mxu0
    %v361 = vpop.f32.mrf.mxu0
    %362 = vdwg.mxu0
    %363 = vmatprep.subr.bf16.mxu0 0
    %364 = vmatpush1.bf16.msra.mxu0 0
    %365 = vmatprep.subr.bf16.mxu0 0
    %366 = vmatpush1.bf16.msra.mxu0 0
    %367 = vmatprep.subr.bf16.mxu0 0
    %368 = vmatpush1.bf16.msra.mxu0 0
    %369 = vmatprep.subr.bf16.mxu0 0
    %370 = vmatpush1.bf16.msra.mxu0 0
    %371 = vmatprep.subr.bf16.mxu0 0
    %372 = vmatpush1.bf16.msra.mxu0 0
    %373 = vmatprep.subr.bf16.mxu0 0
    %374 = vmatpush1.bf16.msra.mxu0 0
    %375 = vmatprep.subr.bf16.mxu0 %v297
    %376 = vmatpush1.bf16.msra.mxu0 %v296
    %377 = vmatprep.subr.bf16.mxu0 %v289
    %378 = vmatpush1.bf16.msra.mxu0 %v288
    %379 = vmatprep.subr.bf16.mxu0 0
    %380 = vmatpush2.bf16.msra.mxu0 0
    %381 = vmatprep.subr.bf16.mxu0 0
    %382 = vmatpush2.bf16.msra.mxu0 0
    %383 = vmatprep.subr.bf16.mxu0 0
    %384 = vmatpush2.bf16.msra.mxu0 0
    %385 = vmatprep.subr.bf16.mxu0 0
    %386 = vmatpush2.bf16.msra.mxu0 0
    %387 = vmatprep.subr.bf16.mxu0 0
    %388 = vmatpush2.bf16.msra.mxu0 0
    %389 = vmatprep.subr.bf16.mxu0 0
    %390 = vmatpush2.bf16.msra.mxu0 0
    %391 = vmatprep.subr.bf16.mxu0 0
    %392 = vmatpush2.bf16.msra.mxu0 0
    %393 = vmatprep.subr.bf16.mxu0 0
    %394 = vmatpush2.bf16.msra.mxu0 0
    %395 = vmatprep.mubr.bf16.mxu0 0
    %396 = vmatmul.mubr.bf16.gmra.mxu0 %v320
    %v397 = vpop.f32.mrf.mxu0
    %v398 = vadd.f32 0.0, %v397
    %v399 = vpop.f32.mrf.mxu0
    %v400 = vadd.f32 0.0, %v399
    %v401 = vpop.f32.mrf.mxu0
    %v402 = vpop.f32.mrf.mxu0
    %403 = vdwg.mxu0
    %404 = vmatprep.subr.bf16.mxu0 0
    %405 = vmatpush1.bf16.msra.mxu0 0
    %406 = vmatprep.subr.bf16.mxu0 0
    %407 = vmatpush1.bf16.msra.mxu0 0
    %408 = vmatprep.subr.bf16.mxu0 0
    %409 = vmatpush1.bf16.msra.mxu0 0
    %410 = vmatprep.subr.bf16.mxu0 0
    %411 = vmatpush1.bf16.msra.mxu0 0
    %412 = vmatprep.subr.bf16.mxu0 0
    %413 = vmatpush1.bf16.msra.mxu0 0
    %414 = vmatprep.subr.bf16.mxu0 0
    %415 = vmatpush1.bf16.msra.mxu0 0
    %416 = vmatprep.subr.bf16.mxu0 %v299
    %417 = vmatpush1.bf16.msra.mxu0 %v298
    %418 = vmatprep.subr.bf16.mxu0 %v291
    %419 = vmatpush1.bf16.msra.mxu0 %v290
    %420 = vmatprep.subr.bf16.mxu0 0
    %421 = vmatpush2.bf16.msra.mxu0 0
    %422 = vmatprep.subr.bf16.mxu0 0
    %423 = vmatpush2.bf16.msra.mxu0 0
    %424 = vmatprep.subr.bf16.mxu0 0
    %425 = vmatpush2.bf16.msra.mxu0 0
    %426 = vmatprep.subr.bf16.mxu0 0
    %427 = vmatpush2.bf16.msra.mxu0 0
    %428 = vmatprep.subr.bf16.mxu0 0
    %429 = vmatpush2.bf16.msra.mxu0 0
    %430 = vmatprep.subr.bf16.mxu0 0
    %431 = vmatpush2.bf16.msra.mxu0 0
    %432 = vmatprep.subr.bf16.mxu0 0
    %433 = vmatpush2.bf16.msra.mxu0 0
    %434 = vmatprep.subr.bf16.mxu0 0
    %435 = vmatpush2.bf16.msra.mxu0 0
    %436 = vmatprep.mubr.bf16.mxu0 0
    %437 = vmatmul.mubr.bf16.gmra.mxu0 %v320
    %v438 = vpop.f32.mrf.mxu0
    %v439 = vadd.f32 0.0, %v438
    %v440 = vpop.f32.mrf.mxu0
    %v441 = vadd.f32 0.0, %v440
    %v442 = vpop.f32.mrf.mxu0
    %v443 = vpop.f32.mrf.mxu0
    %444 = vdwg.mxu0
    %445 = vmatprep.subr.bf16.mxu0 0
    %446 = vmatpush1.bf16.msra.mxu0 0
    %447 = vmatprep.subr.bf16.mxu0 0
    %448 = vmatpush1.bf16.msra.mxu0 0
    %449 = vmatprep.subr.bf16.mxu0 0
    %450 = vmatpush1.bf16.msra.mxu0 0
    %451 = vmatprep.subr.bf16.mxu0 0
    %452 = vmatpush1.bf16.msra.mxu0 0
    %453 = vmatprep.subr.bf16.mxu0 0
    %454 = vmatpush1.bf16.msra.mxu0 0
    %455 = vmatprep.subr.bf16.mxu0 0
    %456 = vmatpush1.bf16.msra.mxu0 0
    %457 = vmatprep.subr.bf16.mxu0 %v301
    %458 = vmatpush1.bf16.msra.mxu0 %v300
    %459 = vmatprep.subr.bf16.mxu0 %v293
    %460 = vmatpush1.bf16.msra.mxu0 %v292
    %461 = vmatprep.subr.bf16.mxu0 0
    %462 = vmatpush2.bf16.msra.mxu0 0
    %463 = vmatprep.subr.bf16.mxu0 0
    %464 = vmatpush2.bf16.msra.mxu0 0
    %465 = vmatprep.subr.bf16.mxu0 0
    %466 = vmatpush2.bf16.msra.mxu0 0
    %467 = vmatprep.subr.bf16.mxu0 0
    %468 = vmatpush2.bf16.msra.mxu0 0
    %469 = vmatprep.subr.bf16.mxu0 0
    %470 = vmatpush2.bf16.msra.mxu0 0
    %471 = vmatprep.subr.bf16.mxu0 0
    %472 = vmatpush2.bf16.msra.mxu0 0
    %473 = vmatprep.subr.bf16.mxu0 0
    %474 = vmatpush2.bf16.msra.mxu0 0
    %475 = vmatprep.subr.bf16.mxu0 0
    %476 = vmatpush2.bf16.msra.mxu0 0
    %477 = vmatprep.mubr.bf16.mxu0 0
    %478 = vmatmul.mubr.bf16.gmra.mxu0 %v320
    %v479 = vpop.f32.mrf.mxu0
    %v480 = vadd.f32 0.0, %v479
    %v481 = vpop.f32.mrf.mxu0
    %v482 = vadd.f32 0.0, %v481
    %v483 = vpop.f32.mrf.mxu0
    %v484 = vpop.f32.mrf.mxu0
    %485 = vdwg.mxu0
    %v487 = vsel %vm318, %v234, 0
    %489 = vmatprep.subr.bf16.mxu0 0
    %490 = vmatpush1.bf16.msra.mxu0 0
    %491 = vmatprep.subr.bf16.mxu0 0
    %492 = vmatpush1.bf16.msra.mxu0 0
    %493 = vmatprep.subr.bf16.mxu0 0
    %494 = vmatpush1.bf16.msra.mxu0 0
    %495 = vmatprep.subr.bf16.mxu0 0
    %496 = vmatpush1.bf16.msra.mxu0 0
    %497 = vmatprep.subr.bf16.mxu0 0
    %498 = vmatpush1.bf16.msra.mxu0 0
    %499 = vmatprep.subr.bf16.mxu0 0
    %500 = vmatpush1.bf16.msra.mxu0 0
    %501 = vmatprep.subr.bf16.mxu0 %v295
    %502 = vmatpush1.bf16.msra.mxu0 %v294
    %503 = vmatprep.subr.bf16.mxu0 %v287
    %504 = vmatpush1.bf16.msra.mxu0 %v286
    %505 = vmatprep.subr.bf16.mxu0 0
    %506 = vmatpush2.bf16.msra.mxu0 0
    %507 = vmatprep.subr.bf16.mxu0 0
    %508 = vmatpush2.bf16.msra.mxu0 0
    %509 = vmatprep.subr.bf16.mxu0 0
    %510 = vmatpush2.bf16.msra.mxu0 0
    %511 = vmatprep.subr.bf16.mxu0 0
    %512 = vmatpush2.bf16.msra.mxu0 0
    %513 = vmatprep.subr.bf16.mxu0 0
    %514 = vmatpush2.bf16.msra.mxu0 0
    %515 = vmatprep.subr.bf16.mxu0 0
    %516 = vmatpush2.bf16.msra.mxu0 0
    %517 = vmatprep.subr.bf16.mxu0 0
    %518 = vmatpush2.bf16.msra.mxu0 0
    %519 = vmatprep.subr.bf16.mxu0 0
    %520 = vmatpush2.bf16.msra.mxu0 0
    %521 = vmatprep.mubr.bf16.mxu0 0
    %522 = vmatmul.mubr.bf16.gmra.mxu0 %v487
    %v523 = vpop.f32.mrf.mxu0
    %v524 = vadd.f32 %v357, %v523
    %v525 = vpop.f32.mrf.mxu0
    %v526 = vadd.f32 %v359, %v525
    %v527 = vpop.f32.mrf.mxu0
    %v528 = vpop.f32.mrf.mxu0
    %529 = vdwg.mxu0
    %530 = vmatprep.subr.bf16.mxu0 0
    %531 = vmatpush1.bf16.msra.mxu0 0
    %532 = vmatprep.subr.bf16.mxu0 0
    %533 = vmatpush1.bf16.msra.mxu0 0
    %534 = vmatprep.subr.bf16.mxu0 0
    %535 = vmatpush1.bf16.msra.mxu0 0
    %536 = vmatprep.subr.bf16.mxu0 0
    %537 = vmatpush1.bf16.msra.mxu0 0
    %538 = vmatprep.subr.bf16.mxu0 0
    %539 = vmatpush1.bf16.msra.mxu0 0
    %540 = vmatprep.subr.bf16.mxu0 0
    %541 = vmatpush1.bf16.msra.mxu0 0
    %542 = vmatprep.subr.bf16.mxu0 %v297
    %543 = vmatpush1.bf16.msra.mxu0 %v296
    %544 = vmatprep.subr.bf16.mxu0 %v289
    %545 = vmatpush1.bf16.msra.mxu0 %v288
    %546 = vmatprep.subr.bf16.mxu0 0
    %547 = vmatpush2.bf16.msra.mxu0 0
    %548 = vmatprep.subr.bf16.mxu0 0
    %549 = vmatpush2.bf16.msra.mxu0 0
    %550 = vmatprep.subr.bf16.mxu0 0
    %551 = vmatpush2.bf16.msra.mxu0 0
    %552 = vmatprep.subr.bf16.mxu0 0
    %553 = vmatpush2.bf16.msra.mxu0 0
    %554 = vmatprep.subr.bf16.mxu0 0
    %555 = vmatpush2.bf16.msra.mxu0 0
    %556 = vmatprep.subr.bf16.mxu0 0
    %557 = vmatpush2.bf16.msra.mxu0 0
    %558 = vmatprep.subr.bf16.mxu0 0
    %559 = vmatpush2.bf16.msra.mxu0 0
    %560 = vmatprep.subr.bf16.mxu0 0
    %561 = vmatpush2.bf16.msra.mxu0 0
    %562 = vmatprep.mubr.bf16.mxu0 0
    %563 = vmatmul.mubr.bf16.gmra.mxu0 %v487
    %v564 = vpop.f32.mrf.mxu0
    %v565 = vadd.f32 %v398, %v564
    %v566 = vpop.f32.mrf.mxu0
    %v567 = vadd.f32 %v400, %v566
    %v568 = vpop.f32.mrf.mxu0
    %v569 = vpop.f32.mrf.mxu0
    %570 = vdwg.mxu0
    %571 = vmatprep.subr.bf16.mxu0 0
    %572 = vmatpush1.bf16.msra.mxu0 0
    %573 = vmatprep.subr.bf16.mxu0 0
    %574 = vmatpush1.bf16.msra.mxu0 0
    %575 = vmatprep.subr.bf16.mxu0 0
    %576 = vmatpush1.bf16.msra.mxu0 0
    %577 = vmatprep.subr.bf16.mxu0 0
    %578 = vmatpush1.bf16.msra.mxu0 0
    %579 = vmatprep.subr.bf16.mxu0 0
    %580 = vmatpush1.bf16.msra.mxu0 0
    %581 = vmatprep.subr.bf16.mxu0 0
    %582 = vmatpush1.bf16.msra.mxu0 0
    %583 = vmatprep.subr.bf16.mxu0 %v299
    %584 = vmatpush1.bf16.msra.mxu0 %v298
    %585 = vmatprep.subr.bf16.mxu0 %v291
    %586 = vmatpush1.bf16.msra.mxu0 %v290
    %587 = vmatprep.subr.bf16.mxu0 0
    %588 = vmatpush2.bf16.msra.mxu0 0
    %589 = vmatprep.subr.bf16.mxu0 0
    %590 = vmatpush2.bf16.msra.mxu0 0
    %591 = vmatprep.subr.bf16.mxu0 0
    %592 = vmatpush2.bf16.msra.mxu0 0
    %593 = vmatprep.subr.bf16.mxu0 0
    %594 = vmatpush2.bf16.msra.mxu0 0
    %595 = vmatprep.subr.bf16.mxu0 0
    %596 = vmatpush2.bf16.msra.mxu0 0
    %597 = vmatprep.subr.bf16.mxu0 0
    %598 = vmatpush2.bf16.msra.mxu0 0
    %599 = vmatprep.subr.bf16.mxu0 0
    %600 = vmatpush2.bf16.msra.mxu0 0
    %601 = vmatprep.subr.bf16.mxu0 0
    %602 = vmatpush2.bf16.msra.mxu0 0
    %603 = vmatprep.mubr.bf16.mxu0 0
    %604 = vmatmul.mubr.bf16.gmra.mxu0 %v487
    %v605 = vpop.f32.mrf.mxu0
    %v606 = vadd.f32 %v439, %v605
    %v607 = vpop.f32.mrf.mxu0
    %v608 = vadd.f32 %v441, %v607
    %v609 = vpop.f32.mrf.mxu0
    %v610 = vpop.f32.mrf.mxu0
    %611 = vdwg.mxu0
    %612 = vmatprep.subr.bf16.mxu0 0
    %613 = vmatpush1.bf16.msra.mxu0 0
    %614 = vmatprep.subr.bf16.mxu0 0
    %615 = vmatpush1.bf16.msra.mxu0 0
    %616 = vmatprep.subr.bf16.mxu0 0
    %617 = vmatpush1.bf16.msra.mxu0 0
    %618 = vmatprep.subr.bf16.mxu0 0
    %619 = vmatpush1.bf16.msra.mxu0 0
    %620 = vmatprep.subr.bf16.mxu0 0
    %621 = vmatpush1.bf16.msra.mxu0 0
    %622 = vmatprep.subr.bf16.mxu0 0
    %623 = vmatpush1.bf16.msra.mxu0 0
    %624 = vmatprep.subr.bf16.mxu0 %v301
    %625 = vmatpush1.bf16.msra.mxu0 %v300
    %626 = vmatprep.subr.bf16.mxu0 %v293
    %627 = vmatpush1.bf16.msra.mxu0 %v292
    %628 = vmatprep.subr.bf16.mxu0 0
    %629 = vmatpush2.bf16.msra.mxu0 0
    %630 = vmatprep.subr.bf16.mxu0 0
    %631 = vmatpush2.bf16.msra.mxu0 0
    %632 = vmatprep.subr.bf16.mxu0 0
    %633 = vmatpush2.bf16.msra.mxu0 0
    %634 = vmatprep.subr.bf16.mxu0 0
    %635 = vmatpush2.bf16.msra.mxu0 0
    %636 = vmatprep.subr.bf16.mxu0 0
    %637 = vmatpush2.bf16.msra.mxu0 0
    %638 = vmatprep.subr.bf16.mxu0 0
    %639 = vmatpush2.bf16.msra.mxu0 0
    %640 = vmatprep.subr.bf16.mxu0 0
    %641 = vmatpush2.bf16.msra.mxu0 0
    %642 = vmatprep.subr.bf16.mxu0 0
    %643 = vmatpush2.bf16.msra.mxu0 0
    %644 = vmatprep.mubr.bf16.mxu0 0
    %645 = vmatmul.mubr.bf16.gmra.mxu0 %v487
    %v646 = vpop.f32.mrf.mxu0
    %v647 = vadd.f32 %v480, %v646
    %v648 = vpop.f32.mrf.mxu0
    %v649 = vadd.f32 %v482, %v648
    %v650 = vpop.f32.mrf.mxu0
    %v651 = vpop.f32.mrf.mxu0
    %652 = vdwg.mxu0
    %v653 = vpack.c.bf16 %v61, %v61
    %v654 = vunpack.c.l.bf16 %v653
    %v655 = vsub.f32 %v61, %v654
    %v656 = vpack.c.bf16 %v655, %v655
    %v673 = vunpack.c.l.b16 %v78
    %v674 = vunpack.c.h.b16 %v78
    %v675 = vunpack.c.l.b16 %v79
    %v676 = vunpack.c.h.b16 %v79
    %v677 = vunpack.c.l.b16 %v80
    %v678 = vunpack.c.h.b16 %v80
    %v679 = vunpack.c.l.b16 %v81
    %v680 = vunpack.c.h.b16 %v81
    %v681 = vunpack.c.l.b16 %v82
    %v682 = vunpack.c.h.b16 %v82
    %v683 = vunpack.c.l.b16 %v83
    %v684 = vunpack.c.h.b16 %v83
    %v685 = vunpack.c.l.b16 %v84
    %v686 = vunpack.c.h.b16 %v84
    %v687 = vunpack.c.l.b16 %v85
    %v688 = vunpack.c.h.b16 %v85
    %v689 = vunpack.c.l.b16 %v86
    %v690 = vunpack.c.h.b16 %v86
    %v691 = vunpack.c.l.b16 %v87
    %v692 = vunpack.c.h.b16 %v87
    %v693 = vunpack.c.l.b16 %v88
    %v694 = vunpack.c.h.b16 %v88
    %v695 = vunpack.c.l.b16 %v89
    %v696 = vunpack.c.h.b16 %v89
    %v697 = vunpack.c.l.b16 %v90
    %v698 = vunpack.c.h.b16 %v90
    %v699 = vunpack.c.l.b16 %v91
    %v700 = vunpack.c.h.b16 %v91
    %v701 = vunpack.c.l.b16 %v92
    %v702 = vunpack.c.h.b16 %v92
    %v703 = vunpack.c.l.b16 %v93
    %v704 = vunpack.c.h.b16 %v93
    %v705 = vpack.c.b16 %v681, %v673
    %v706 = vpack.c.b16 %v682, %v674
    %v707 = vpack.c.b16 %v683, %v675
    %v708 = vpack.c.b16 %v684, %v676
    %v709 = vpack.c.b16 %v685, %v677
    %v710 = vpack.c.b16 %v686, %v678
    %v711 = vpack.c.b16 %v687, %v679
    %v712 = vpack.c.b16 %v688, %v680
    %v713 = vpack.c.b16 %v697, %v689
    %v714 = vpack.c.b16 %v698, %v690
    %v715 = vpack.c.b16 %v699, %v691
    %v716 = vpack.c.b16 %v700, %v692
    %v717 = vpack.c.b16 %v701, %v693
    %v718 = vpack.c.b16 %v702, %v694
    %v719 = vpack.c.b16 %v703, %v695
    %v720 = vpack.c.b16 %v704, %v696
    %v738 = vsel %vm318, %v656, 0
    %740 = vmatprep.subr.bf16.mxu0 0
    %741 = vmatpush1.bf16.msra.mxu0 0
    %742 = vmatprep.subr.bf16.mxu0 0
    %743 = vmatpush1.bf16.msra.mxu0 0
    %744 = vmatprep.subr.bf16.mxu0 0
    %745 = vmatpush1.bf16.msra.mxu0 0
    %746 = vmatprep.subr.bf16.mxu0 0
    %747 = vmatpush1.bf16.msra.mxu0 0
    %748 = vmatprep.subr.bf16.mxu0 0
    %749 = vmatpush1.bf16.msra.mxu0 0
    %750 = vmatprep.subr.bf16.mxu0 0
    %751 = vmatpush1.bf16.msra.mxu0 0
    %752 = vmatprep.subr.bf16.mxu0 %v714
    %753 = vmatpush1.bf16.msra.mxu0 %v713
    %754 = vmatprep.subr.bf16.mxu0 %v706
    %755 = vmatpush1.bf16.msra.mxu0 %v705
    %756 = vmatprep.subr.bf16.mxu0 0
    %757 = vmatpush2.bf16.msra.mxu0 0
    %758 = vmatprep.subr.bf16.mxu0 0
    %759 = vmatpush2.bf16.msra.mxu0 0
    %760 = vmatprep.subr.bf16.mxu0 0
    %761 = vmatpush2.bf16.msra.mxu0 0
    %762 = vmatprep.subr.bf16.mxu0 0
    %763 = vmatpush2.bf16.msra.mxu0 0
    %764 = vmatprep.subr.bf16.mxu0 0
    %765 = vmatpush2.bf16.msra.mxu0 0
    %766 = vmatprep.subr.bf16.mxu0 0
    %767 = vmatpush2.bf16.msra.mxu0 0
    %768 = vmatprep.subr.bf16.mxu0 0
    %769 = vmatpush2.bf16.msra.mxu0 0
    %770 = vmatprep.subr.bf16.mxu0 0
    %771 = vmatpush2.bf16.msra.mxu0 0
    %772 = vmatprep.mubr.bf16.mxu0 0
    %773 = vmatmul.mubr.bf16.gmra.mxu0 %v738
    %v774 = vpop.f32.mrf.mxu0
    %v775 = vadd.f32 0.0, %v774
    %v776 = vpop.f32.mrf.mxu0
    %v777 = vadd.f32 0.0, %v776
    %v778 = vpop.f32.mrf.mxu0
    %v779 = vpop.f32.mrf.mxu0
    %780 = vdwg.mxu0
    %781 = vmatprep.subr.bf16.mxu0 0
    %782 = vmatpush1.bf16.msra.mxu0 0
    %783 = vmatprep.subr.bf16.mxu0 0
    %784 = vmatpush1.bf16.msra.mxu0 0
    %785 = vmatprep.subr.bf16.mxu0 0
    %786 = vmatpush1.bf16.msra.mxu0 0
    %787 = vmatprep.subr.bf16.mxu0 0
    %788 = vmatpush1.bf16.msra.mxu0 0
    %789 = vmatprep.subr.bf16.mxu0 0
    %790 = vmatpush1.bf16.msra.mxu0 0
    %791 = vmatprep.subr.bf16.mxu0 0
    %792 = vmatpush1.bf16.msra.mxu0 0
    %793 = vmatprep.subr.bf16.mxu0 %v716
    %794 = vmatpush1.bf16.msra.mxu0 %v715
    %795 = vmatprep.subr.bf16.mxu0 %v708
    %796 = vmatpush1.bf16.msra.mxu0 %v707
    %797 = vmatprep.subr.bf16.mxu0 0
    %798 = vmatpush2.bf16.msra.mxu0 0
    %799 = vmatprep.subr.bf16.mxu0 0
    %800 = vmatpush2.bf16.msra.mxu0 0
    %801 = vmatprep.subr.bf16.mxu0 0
    %802 = vmatpush2.bf16.msra.mxu0 0
    %803 = vmatprep.subr.bf16.mxu0 0
    %804 = vmatpush2.bf16.msra.mxu0 0
    %805 = vmatprep.subr.bf16.mxu0 0
    %806 = vmatpush2.bf16.msra.mxu0 0
    %807 = vmatprep.subr.bf16.mxu0 0
    %808 = vmatpush2.bf16.msra.mxu0 0
    %809 = vmatprep.subr.bf16.mxu0 0
    %810 = vmatpush2.bf16.msra.mxu0 0
    %811 = vmatprep.subr.bf16.mxu0 0
    %812 = vmatpush2.bf16.msra.mxu0 0
    %813 = vmatprep.mubr.bf16.mxu0 0
    %814 = vmatmul.mubr.bf16.gmra.mxu0 %v738
    %v815 = vpop.f32.mrf.mxu0
    %v816 = vadd.f32 0.0, %v815
    %v817 = vpop.f32.mrf.mxu0
    %v818 = vadd.f32 0.0, %v817
    %v819 = vpop.f32.mrf.mxu0
    %v820 = vpop.f32.mrf.mxu0
    %821 = vdwg.mxu0
    %822 = vmatprep.subr.bf16.mxu0 0
    %823 = vmatpush1.bf16.msra.mxu0 0
    %824 = vmatprep.subr.bf16.mxu0 0
    %825 = vmatpush1.bf16.msra.mxu0 0
    %826 = vmatprep.subr.bf16.mxu0 0
    %827 = vmatpush1.bf16.msra.mxu0 0
    %828 = vmatprep.subr.bf16.mxu0 0
    %829 = vmatpush1.bf16.msra.mxu0 0
    %830 = vmatprep.subr.bf16.mxu0 0
    %831 = vmatpush1.bf16.msra.mxu0 0
    %832 = vmatprep.subr.bf16.mxu0 0
    %833 = vmatpush1.bf16.msra.mxu0 0
    %834 = vmatprep.subr.bf16.mxu0 %v718
    %835 = vmatpush1.bf16.msra.mxu0 %v717
    %836 = vmatprep.subr.bf16.mxu0 %v710
    %837 = vmatpush1.bf16.msra.mxu0 %v709
    %838 = vmatprep.subr.bf16.mxu0 0
    %839 = vmatpush2.bf16.msra.mxu0 0
    %840 = vmatprep.subr.bf16.mxu0 0
    %841 = vmatpush2.bf16.msra.mxu0 0
    %842 = vmatprep.subr.bf16.mxu0 0
    %843 = vmatpush2.bf16.msra.mxu0 0
    %844 = vmatprep.subr.bf16.mxu0 0
    %845 = vmatpush2.bf16.msra.mxu0 0
    %846 = vmatprep.subr.bf16.mxu0 0
    %847 = vmatpush2.bf16.msra.mxu0 0
    %848 = vmatprep.subr.bf16.mxu0 0
    %849 = vmatpush2.bf16.msra.mxu0 0
    %850 = vmatprep.subr.bf16.mxu0 0
    %851 = vmatpush2.bf16.msra.mxu0 0
    %852 = vmatprep.subr.bf16.mxu0 0
    %853 = vmatpush2.bf16.msra.mxu0 0
    %854 = vmatprep.mubr.bf16.mxu0 0
    %855 = vmatmul.mubr.bf16.gmra.mxu0 %v738
    %v856 = vpop.f32.mrf.mxu0
    %v857 = vadd.f32 0.0, %v856
    %v858 = vpop.f32.mrf.mxu0
    %v859 = vadd.f32 0.0, %v858
    %v860 = vpop.f32.mrf.mxu0
    %v861 = vpop.f32.mrf.mxu0
    %862 = vdwg.mxu0
    %863 = vmatprep.subr.bf16.mxu0 0
    %864 = vmatpush1.bf16.msra.mxu0 0
    %865 = vmatprep.subr.bf16.mxu0 0
    %866 = vmatpush1.bf16.msra.mxu0 0
    %867 = vmatprep.subr.bf16.mxu0 0
    %868 = vmatpush1.bf16.msra.mxu0 0
    %869 = vmatprep.subr.bf16.mxu0 0
    %870 = vmatpush1.bf16.msra.mxu0 0
    %871 = vmatprep.subr.bf16.mxu0 0
    %872 = vmatpush1.bf16.msra.mxu0 0
    %873 = vmatprep.subr.bf16.mxu0 0
    %874 = vmatpush1.bf16.msra.mxu0 0
    %875 = vmatprep.subr.bf16.mxu0 %v720
    %876 = vmatpush1.bf16.msra.mxu0 %v719
    %877 = vmatprep.subr.bf16.mxu0 %v712
    %878 = vmatpush1.bf16.msra.mxu0 %v711
    %879 = vmatprep.subr.bf16.mxu0 0
    %880 = vmatpush2.bf16.msra.mxu0 0
    %881 = vmatprep.subr.bf16.mxu0 0
    %882 = vmatpush2.bf16.msra.mxu0 0
    %883 = vmatprep.subr.bf16.mxu0 0
    %884 = vmatpush2.bf16.msra.mxu0 0
    %885 = vmatprep.subr.bf16.mxu0 0
    %886 = vmatpush2.bf16.msra.mxu0 0
    %887 = vmatprep.subr.bf16.mxu0 0
    %888 = vmatpush2.bf16.msra.mxu0 0
    %889 = vmatprep.subr.bf16.mxu0 0
    %890 = vmatpush2.bf16.msra.mxu0 0
    %891 = vmatprep.subr.bf16.mxu0 0
    %892 = vmatpush2.bf16.msra.mxu0 0
    %893 = vmatprep.subr.bf16.mxu0 0
    %894 = vmatpush2.bf16.msra.mxu0 0
    %895 = vmatprep.mubr.bf16.mxu0 0
    %896 = vmatmul.mubr.bf16.gmra.mxu0 %v738
    %v897 = vpop.f32.mrf.mxu0
    %v898 = vadd.f32 0.0, %v897
    %v899 = vpop.f32.mrf.mxu0
    %v900 = vadd.f32 0.0, %v899
    %v901 = vpop.f32.mrf.mxu0
    %v902 = vpop.f32.mrf.mxu0
    %903 = vdwg.mxu0
    %v905 = vsel %vm318, %v653, 0
    %907 = vmatprep.subr.bf16.mxu0 0
    %908 = vmatpush1.bf16.msra.mxu0 0
    %909 = vmatprep.subr.bf16.mxu0 0
    %910 = vmatpush1.bf16.msra.mxu0 0
    %911 = vmatprep.subr.bf16.mxu0 0
    %912 = vmatpush1.bf16.msra.mxu0 0
    %913 = vmatprep.subr.bf16.mxu0 0
    %914 = vmatpush1.bf16.msra.mxu0 0
    %915 = vmatprep.subr.bf16.mxu0 0
    %916 = vmatpush1.bf16.msra.mxu0 0
    %917 = vmatprep.subr.bf16.mxu0 0
    %918 = vmatpush1.bf16.msra.mxu0 0
    %919 = vmatprep.subr.bf16.mxu0 %v714
    %920 = vmatpush1.bf16.msra.mxu0 %v713
    %921 = vmatprep.subr.bf16.mxu0 %v706
    %922 = vmatpush1.bf16.msra.mxu0 %v705
    %923 = vmatprep.subr.bf16.mxu0 0
    %924 = vmatpush2.bf16.msra.mxu0 0
    %925 = vmatprep.subr.bf16.mxu0 0
    %926 = vmatpush2.bf16.msra.mxu0 0
    %927 = vmatprep.subr.bf16.mxu0 0
    %928 = vmatpush2.bf16.msra.mxu0 0
    %929 = vmatprep.subr.bf16.mxu0 0
    %930 = vmatpush2.bf16.msra.mxu0 0
    %931 = vmatprep.subr.bf16.mxu0 0
    %932 = vmatpush2.bf16.msra.mxu0 0
    %933 = vmatprep.subr.bf16.mxu0 0
    %934 = vmatpush2.bf16.msra.mxu0 0
    %935 = vmatprep.subr.bf16.mxu0 0
    %936 = vmatpush2.bf16.msra.mxu0 0
    %937 = vmatprep.subr.bf16.mxu0 0
    %938 = vmatpush2.bf16.msra.mxu0 0
    %939 = vmatprep.mubr.bf16.mxu0 0
    %940 = vmatmul.mubr.bf16.gmra.mxu0 %v905
    %v941 = vpop.f32.mrf.mxu0
    %v942 = vadd.f32 %v775, %v941
    %v943 = vpop.f32.mrf.mxu0
    %v944 = vadd.f32 %v777, %v943
    %v945 = vpop.f32.mrf.mxu0
    %v946 = vpop.f32.mrf.mxu0
    %947 = vdwg.mxu0
    %948 = vmatprep.subr.bf16.mxu0 0
    %949 = vmatpush1.bf16.msra.mxu0 0
    %950 = vmatprep.subr.bf16.mxu0 0
    %951 = vmatpush1.bf16.msra.mxu0 0
    %952 = vmatprep.subr.bf16.mxu0 0
    %953 = vmatpush1.bf16.msra.mxu0 0
    %954 = vmatprep.subr.bf16.mxu0 0
    %955 = vmatpush1.bf16.msra.mxu0 0
    %956 = vmatprep.subr.bf16.mxu0 0
    %957 = vmatpush1.bf16.msra.mxu0 0
    %958 = vmatprep.subr.bf16.mxu0 0
    %959 = vmatpush1.bf16.msra.mxu0 0
    %960 = vmatprep.subr.bf16.mxu0 %v716
    %961 = vmatpush1.bf16.msra.mxu0 %v715
    %962 = vmatprep.subr.bf16.mxu0 %v708
    %963 = vmatpush1.bf16.msra.mxu0 %v707
    %964 = vmatprep.subr.bf16.mxu0 0
    %965 = vmatpush2.bf16.msra.mxu0 0
    %966 = vmatprep.subr.bf16.mxu0 0
    %967 = vmatpush2.bf16.msra.mxu0 0
    %968 = vmatprep.subr.bf16.mxu0 0
    %969 = vmatpush2.bf16.msra.mxu0 0
    %970 = vmatprep.subr.bf16.mxu0 0
    %971 = vmatpush2.bf16.msra.mxu0 0
    %972 = vmatprep.subr.bf16.mxu0 0
    %973 = vmatpush2.bf16.msra.mxu0 0
    %974 = vmatprep.subr.bf16.mxu0 0
    %975 = vmatpush2.bf16.msra.mxu0 0
    %976 = vmatprep.subr.bf16.mxu0 0
    %977 = vmatpush2.bf16.msra.mxu0 0
    %978 = vmatprep.subr.bf16.mxu0 0
    %979 = vmatpush2.bf16.msra.mxu0 0
    %980 = vmatprep.mubr.bf16.mxu0 0
    %981 = vmatmul.mubr.bf16.gmra.mxu0 %v905
    %v982 = vpop.f32.mrf.mxu0
    %v983 = vadd.f32 %v816, %v982
    %v984 = vpop.f32.mrf.mxu0
    %v985 = vadd.f32 %v818, %v984
    %v986 = vpop.f32.mrf.mxu0
    %v987 = vpop.f32.mrf.mxu0
    %988 = vdwg.mxu0
    %989 = vmatprep.subr.bf16.mxu0 0
    %990 = vmatpush1.bf16.msra.mxu0 0
    %991 = vmatprep.subr.bf16.mxu0 0
    %992 = vmatpush1.bf16.msra.mxu0 0
    %993 = vmatprep.subr.bf16.mxu0 0
    %994 = vmatpush1.bf16.msra.mxu0 0
    %995 = vmatprep.subr.bf16.mxu0 0
    %996 = vmatpush1.bf16.msra.mxu0 0
    %997 = vmatprep.subr.bf16.mxu0 0
    %998 = vmatpush1.bf16.msra.mxu0 0
    %999 = vmatprep.subr.bf16.mxu0 0
    %1000 = vmatpush1.bf16.msra.mxu0 0
    %1001 = vmatprep.subr.bf16.mxu0 %v718
    %1002 = vmatpush1.bf16.msra.mxu0 %v717
    %1003 = vmatprep.subr.bf16.mxu0 %v710
    %1004 = vmatpush1.bf16.msra.mxu0 %v709
    %1005 = vmatprep.subr.bf16.mxu0 0
    %1006 = vmatpush2.bf16.msra.mxu0 0
    %1007 = vmatprep.subr.bf16.mxu0 0
    %1008 = vmatpush2.bf16.msra.mxu0 0
    %1009 = vmatprep.subr.bf16.mxu0 0
    %1010 = vmatpush2.bf16.msra.mxu0 0
    %1011 = vmatprep.subr.bf16.mxu0 0
    %1012 = vmatpush2.bf16.msra.mxu0 0
    %1013 = vmatprep.subr.bf16.mxu0 0
    %1014 = vmatpush2.bf16.msra.mxu0 0
    %1015 = vmatprep.subr.bf16.mxu0 0
    %1016 = vmatpush2.bf16.msra.mxu0 0
    %1017 = vmatprep.subr.bf16.mxu0 0
    %1018 = vmatpush2.bf16.msra.mxu0 0
    %1019 = vmatprep.subr.bf16.mxu0 0
    %1020 = vmatpush2.bf16.msra.mxu0 0
    %1021 = vmatprep.mubr.bf16.mxu0 0
    %1022 = vmatmul.mubr.bf16.gmra.mxu0 %v905
    %v1023 = vpop.f32.mrf.mxu0
    %v1024 = vadd.f32 %v857, %v1023
    %v1025 = vpop.f32.mrf.mxu0
    %v1026 = vadd.f32 %v859, %v1025
    %v1027 = vpop.f32.mrf.mxu0
    %v1028 = vpop.f32.mrf.mxu0
    %1029 = vdwg.mxu0
    %1030 = vmatprep.subr.bf16.mxu0 0
    %1031 = vmatpush1.bf16.msra.mxu0 0
    %1032 = vmatprep.subr.bf16.mxu0 0
    %1033 = vmatpush1.bf16.msra.mxu0 0
    %1034 = vmatprep.subr.bf16.mxu0 0
    %1035 = vmatpush1.bf16.msra.mxu0 0
    %1036 = vmatprep.subr.bf16.mxu0 0
    %1037 = vmatpush1.bf16.msra.mxu0 0
    %1038 = vmatprep.subr.bf16.mxu0 0
    %1039 = vmatpush1.bf16.msra.mxu0 0
    %1040 = vmatprep.subr.bf16.mxu0 0
    %1041 = vmatpush1.bf16.msra.mxu0 0
    %1042 = vmatprep.subr.bf16.mxu0 %v720
    %1043 = vmatpush1.bf16.msra.mxu0 %v719
    %1044 = vmatprep.subr.bf16.mxu0 %v712
    %1045 = vmatpush1.bf16.msra.mxu0 %v711
    %1046 = vmatprep.subr.bf16.mxu0 0
    %1047 = vmatpush2.bf16.msra.mxu0 0
    %1048 = vmatprep.subr.bf16.mxu0 0
    %1049 = vmatpush2.bf16.msra.mxu0 0
    %1050 = vmatprep.subr.bf16.mxu0 0
    %1051 = vmatpush2.bf16.msra.mxu0 0
    %1052 = vmatprep.subr.bf16.mxu0 0
    %1053 = vmatpush2.bf16.msra.mxu0 0
    %1054 = vmatprep.subr.bf16.mxu0 0
    %1055 = vmatpush2.bf16.msra.mxu0 0
    %1056 = vmatprep.subr.bf16.mxu0 0
    %1057 = vmatpush2.bf16.msra.mxu0 0
    %1058 = vmatprep.subr.bf16.mxu0 0
    %1059 = vmatpush2.bf16.msra.mxu0 0
    %1060 = vmatprep.subr.bf16.mxu0 0
    %1061 = vmatpush2.bf16.msra.mxu0 0
    %1062 = vmatprep.mubr.bf16.mxu0 0
    %1063 = vmatmul.mubr.bf16.gmra.mxu0 %v905
    %v1064 = vpop.f32.mrf.mxu0
    %v1065 = vadd.f32 %v898, %v1064
    %v1066 = vpop.f32.mrf.mxu0
    %v1067 = vadd.f32 %v900, %v1066
    %v1068 = vpop.f32.mrf.mxu0
    %v1069 = vpop.f32.mrf.mxu0
    %1070 = vdwg.mxu0
    %v1071 = vld [vmem:[#allocation2] sm:$0xff]
    %v1072 = vld [vmem:[#allocation2 + $0x8] sm:$0xff]
    %v1073 = vld [vmem:[#allocation2 + $0x10] sm:$0xff]
    %v1074 = vld [vmem:[#allocation2 + $0x18] sm:$0xff]
    %v1075 = vld [vmem:[#allocation2 + $0x20] sm:$0xff]
    %v1076 = vld [vmem:[#allocation2 + $0x28] sm:$0xff]
    %v1077 = vld [vmem:[#allocation2 + $0x30] sm:$0xff]
    %v1078 = vld [vmem:[#allocation2 + $0x38] sm:$0xff]
    %v1079 = vmul.f32 %v524, %v942
    %v1080 = vmul.f32 %v526, %v944
    %v1081 = vmul.f32 %v565, %v983
    %v1082 = vmul.f32 %v567, %v985
    %v1083 = vmul.f32 %v606, %v1024
    %v1084 = vmul.f32 %v608, %v1026
    %v1085 = vmul.f32 %v647, %v1065
    %v1086 = vmul.f32 %v649, %v1067
    %v1087 = vadd.f32 %v1071, %v1079
    %v1088 = vadd.f32 %v1072, %v1080
    %v1089 = vadd.f32 %v1073, %v1081
    %v1090 = vadd.f32 %v1074, %v1082
    %v1091 = vadd.f32 %v1075, %v1083
    %v1092 = vadd.f32 %v1076, %v1084
    %v1093 = vadd.f32 %v1077, %v1085
    %v1094 = vadd.f32 %v1078, %v1086
    %v1095 = vmul.f32 %v226, %v233
    %v1096 = vsel %vm318, %v1095, 0.0
    %1097 = vadd.xlane.f32.xlu0 %v1096
    %v1098 = vpop.xlane.xlu0 %1097
    %v1099 = vadd.f32 %v1098, 1e-06
    %v1100 = vpack.c.bf16 %v226, %v226
    %v1101 = vunpack.c.l.bf16 %v1100
    %v1102 = vsub.f32 %v226, %v1101
    %v1103 = vpack.c.bf16 %v1102, %v1102
    %v1105 = vsel %vm318, %v1103, 0
    %1107 = vmatprep.subr.bf16.mxu0 0
    %1108 = vmatpush1.bf16.msra.mxu0 0
    %1109 = vmatprep.subr.bf16.mxu0 0
    %1110 = vmatpush1.bf16.msra.mxu0 0
    %1111 = vmatprep.subr.bf16.mxu0 0
    %1112 = vmatpush1.bf16.msra.mxu0 0
    %1113 = vmatprep.subr.bf16.mxu0 0
    %1114 = vmatpush1.bf16.msra.mxu0 0
    %1115 = vmatprep.subr.bf16.mxu0 0
    %1116 = vmatpush1.bf16.msra.mxu0 0
    %1117 = vmatprep.subr.bf16.mxu0 0
    %1118 = vmatpush1.bf16.msra.mxu0 0
    %1119 = vmatprep.subr.bf16.mxu0 %v295
    %1120 = vmatpush1.bf16.msra.mxu0 %v294
    %1121 = vmatprep.subr.bf16.mxu0 %v287
    %1122 = vmatpush1.bf16.msra.mxu0 %v286
    %1123 = vmatprep.subr.bf16.mxu0 0
    %1124 = vmatpush2.bf16.msra.mxu0 0
    %1125 = vmatprep.subr.bf16.mxu0 0
    %1126 = vmatpush2.bf16.msra.mxu0 0
    %1127 = vmatprep.subr.bf16.mxu0 0
    %1128 = vmatpush2.bf16.msra.mxu0 0
    %1129 = vmatprep.subr.bf16.mxu0 0
    %1130 = vmatpush2.bf16.msra.mxu0 0
    %1131 = vmatprep.subr.bf16.mxu0 0
    %1132 = vmatpush2.bf16.msra.mxu0 0
    %1133 = vmatprep.subr.bf16.mxu0 0
    %1134 = vmatpush2.bf16.msra.mxu0 0
    %1135 = vmatprep.subr.bf16.mxu0 0
    %1136 = vmatpush2.bf16.msra.mxu0 0
    %1137 = vmatprep.subr.bf16.mxu0 0
    %1138 = vmatpush2.bf16.msra.mxu0 0
    %1139 = vmatprep.mubr.bf16.mxu0 0
    %1140 = vmatmul.mubr.bf16.gmra.mxu0 %v1105
    %v1141 = vpop.f32.mrf.mxu0
    %v1142 = vadd.f32 0.0, %v1141
    %v1143 = vpop.f32.mrf.mxu0
    %v1144 = vadd.f32 0.0, %v1143
    %v1145 = vpop.f32.mrf.mxu0
    %v1146 = vpop.f32.mrf.mxu0
    %1147 = vdwg.mxu0
    %1148 = vmatprep.subr.bf16.mxu0 0
    %1149 = vmatpush1.bf16.msra.mxu0 0
    %1150 = vmatprep.subr.bf16.mxu0 0
    %1151 = vmatpush1.bf16.msra.mxu0 0
    %1152 = vmatprep.subr.bf16.mxu0 0
    %1153 = vmatpush1.bf16.msra.mxu0 0
    %1154 = vmatprep.subr.bf16.mxu0 0
    %1155 = vmatpush1.bf16.msra.mxu0 0
    %1156 = vmatprep.subr.bf16.mxu0 0
    %1157 = vmatpush1.bf16.msra.mxu0 0
    %1158 = vmatprep.subr.bf16.mxu0 0
    %1159 = vmatpush1.bf16.msra.mxu0 0
    %1160 = vmatprep.subr.bf16.mxu0 %v297
    %1161 = vmatpush1.bf16.msra.mxu0 %v296
    %1162 = vmatprep.subr.bf16.mxu0 %v289
    %1163 = vmatpush1.bf16.msra.mxu0 %v288
    %1164 = vmatprep.subr.bf16.mxu0 0
    %1165 = vmatpush2.bf16.msra.mxu0 0
    %1166 = vmatprep.subr.bf16.mxu0 0
    %1167 = vmatpush2.bf16.msra.mxu0 0
    %1168 = vmatprep.subr.bf16.mxu0 0
    %1169 = vmatpush2.bf16.msra.mxu0 0
    %1170 = vmatprep.subr.bf16.mxu0 0
    %1171 = vmatpush2.bf16.msra.mxu0 0
    %1172 = vmatprep.subr.bf16.mxu0 0
    %1173 = vmatpush2.bf16.msra.mxu0 0
    %1174 = vmatprep.subr.bf16.mxu0 0
    %1175 = vmatpush2.bf16.msra.mxu0 0
    %1176 = vmatprep.subr.bf16.mxu0 0
    %1177 = vmatpush2.bf16.msra.mxu0 0
    %1178 = vmatprep.subr.bf16.mxu0 0
    %1179 = vmatpush2.bf16.msra.mxu0 0
    %1180 = vmatprep.mubr.bf16.mxu0 0
    %1181 = vmatmul.mubr.bf16.gmra.mxu0 %v1105
    %v1182 = vpop.f32.mrf.mxu0
    %v1183 = vadd.f32 0.0, %v1182
    %v1184 = vpop.f32.mrf.mxu0
    %v1185 = vadd.f32 0.0, %v1184
    %v1186 = vpop.f32.mrf.mxu0
    %v1187 = vpop.f32.mrf.mxu0
    %1188 = vdwg.mxu0
    %1189 = vmatprep.subr.bf16.mxu0 0
    %1190 = vmatpush1.bf16.msra.mxu0 0
    %1191 = vmatprep.subr.bf16.mxu0 0
    %1192 = vmatpush1.bf16.msra.mxu0 0
    %1193 = vmatprep.subr.bf16.mxu0 0
    %1194 = vmatpush1.bf16.msra.mxu0 0
    %1195 = vmatprep.subr.bf16.mxu0 0
    %1196 = vmatpush1.bf16.msra.mxu0 0
    %1197 = vmatprep.subr.bf16.mxu0 0
    %1198 = vmatpush1.bf16.msra.mxu0 0
    %1199 = vmatprep.subr.bf16.mxu0 0
    %1200 = vmatpush1.bf16.msra.mxu0 0
    %1201 = vmatprep.subr.bf16.mxu0 %v299
    %1202 = vmatpush1.bf16.msra.mxu0 %v298
    %1203 = vmatprep.subr.bf16.mxu0 %v291
    %1204 = vmatpush1.bf16.msra.mxu0 %v290
    %1205 = vmatprep.subr.bf16.mxu0 0
    %1206 = vmatpush2.bf16.msra.mxu0 0
    %1207 = vmatprep.subr.bf16.mxu0 0
    %1208 = vmatpush2.bf16.msra.mxu0 0
    %1209 = vmatprep.subr.bf16.mxu0 0
    %1210 = vmatpush2.bf16.msra.mxu0 0
    %1211 = vmatprep.subr.bf16.mxu0 0
    %1212 = vmatpush2.bf16.msra.mxu0 0
    %1213 = vmatprep.subr.bf16.mxu0 0
    %1214 = vmatpush2.bf16.msra.mxu0 0
    %1215 = vmatprep.subr.bf16.mxu0 0
    %1216 = vmatpush2.bf16.msra.mxu0 0
    %1217 = vmatprep.subr.bf16.mxu0 0
    %1218 = vmatpush2.bf16.msra.mxu0 0
    %1219 = vmatprep.subr.bf16.mxu0 0
    %1220 = vmatpush2.bf16.msra.mxu0 0
    %1221 = vmatprep.mubr.bf16.mxu0 0
    %1222 = vmatmul.mubr.bf16.gmra.mxu0 %v1105
    %v1223 = vpop.f32.mrf.mxu0
    %v1224 = vadd.f32 0.0, %v1223
    %v1225 = vpop.f32.mrf.mxu0
    %v1226 = vadd.f32 0.0, %v1225
    %v1227 = vpop.f32.mrf.mxu0
    %v1228 = vpop.f32.mrf.mxu0
    %1229 = vdwg.mxu0
    %1230 = vmatprep.subr.bf16.mxu0 0
    %1231 = vmatpush1.bf16.msra.mxu0 0
    %1232 = vmatprep.subr.bf16.mxu0 0
    %1233 = vmatpush1.bf16.msra.mxu0 0
    %1234 = vmatprep.subr.bf16.mxu0 0
    %1235 = vmatpush1.bf16.msra.mxu0 0
    %1236 = vmatprep.subr.bf16.mxu0 0
    %1237 = vmatpush1.bf16.msra.mxu0 0
    %1238 = vmatprep.subr.bf16.mxu0 0
    %1239 = vmatpush1.bf16.msra.mxu0 0
    %1240 = vmatprep.subr.bf16.mxu0 0
    %1241 = vmatpush1.bf16.msra.mxu0 0
    %1242 = vmatprep.subr.bf16.mxu0 %v301
    %1243 = vmatpush1.bf16.msra.mxu0 %v300
    %1244 = vmatprep.subr.bf16.mxu0 %v293
    %1245 = vmatpush1.bf16.msra.mxu0 %v292
    %1246 = vmatprep.subr.bf16.mxu0 0
    %1247 = vmatpush2.bf16.msra.mxu0 0
    %1248 = vmatprep.subr.bf16.mxu0 0
    %1249 = vmatpush2.bf16.msra.mxu0 0
    %1250 = vmatprep.subr.bf16.mxu0 0
    %1251 = vmatpush2.bf16.msra.mxu0 0
    %1252 = vmatprep.subr.bf16.mxu0 0
    %1253 = vmatpush2.bf16.msra.mxu0 0
    %1254 = vmatprep.subr.bf16.mxu0 0
    %1255 = vmatpush2.bf16.msra.mxu0 0
    %1256 = vmatprep.subr.bf16.mxu0 0
    %1257 = vmatpush2.bf16.msra.mxu0 0
    %1258 = vmatprep.subr.bf16.mxu0 0
    %1259 = vmatpush2.bf16.msra.mxu0 0
    %1260 = vmatprep.subr.bf16.mxu0 0
    %1261 = vmatpush2.bf16.msra.mxu0 0
    %1262 = vmatprep.mubr.bf16.mxu0 0
    %1263 = vmatmul.mubr.bf16.gmra.mxu0 %v1105
    %v1264 = vpop.f32.mrf.mxu0
    %v1265 = vadd.f32 0.0, %v1264
    %v1266 = vpop.f32.mrf.mxu0
    %v1267 = vadd.f32 0.0, %v1266
    %v1268 = vpop.f32.mrf.mxu0
    %v1269 = vpop.f32.mrf.mxu0
    %1270 = vdwg.mxu0
    %v1272 = vsel %vm318, %v1100, 0
    %1274 = vmatprep.subr.bf16.mxu0 0
    %1275 = vmatpush1.bf16.msra.mxu0 0
    %1276 = vmatprep.subr.bf16.mxu0 0
    %1277 = vmatpush1.bf16.msra.mxu0 0
    %1278 = vmatprep.subr.bf16.mxu0 0
    %1279 = vmatpush1.bf16.msra.mxu0 0
    %1280 = vmatprep.subr.bf16.mxu0 0
    %1281 = vmatpush1.bf16.msra.mxu0 0
    %1282 = vmatprep.subr.bf16.mxu0 0
    %1283 = vmatpush1.bf16.msra.mxu0 0
    %1284 = vmatprep.subr.bf16.mxu0 0
    %1285 = vmatpush1.bf16.msra.mxu0 0
    %1286 = vmatprep.subr.bf16.mxu0 %v295
    %1287 = vmatpush1.bf16.msra.mxu0 %v294
    %1288 = vmatprep.subr.bf16.mxu0 %v287
    %1289 = vmatpush1.bf16.msra.mxu0 %v286
    %1290 = vmatprep.subr.bf16.mxu0 0
    %1291 = vmatpush2.bf16.msra.mxu0 0
    %1292 = vmatprep.subr.bf16.mxu0 0
    %1293 = vmatpush2.bf16.msra.mxu0 0
    %1294 = vmatprep.subr.bf16.mxu0 0
    %1295 = vmatpush2.bf16.msra.mxu0 0
    %1296 = vmatprep.subr.bf16.mxu0 0
    %1297 = vmatpush2.bf16.msra.mxu0 0
    %1298 = vmatprep.subr.bf16.mxu0 0
    %1299 = vmatpush2.bf16.msra.mxu0 0
    %1300 = vmatprep.subr.bf16.mxu0 0
    %1301 = vmatpush2.bf16.msra.mxu0 0
    %1302 = vmatprep.subr.bf16.mxu0 0
    %1303 = vmatpush2.bf16.msra.mxu0 0
    %1304 = vmatprep.subr.bf16.mxu0 0
    %1305 = vmatpush2.bf16.msra.mxu0 0
    %1306 = vmatprep.mubr.bf16.mxu0 0
    %1307 = vmatmul.mubr.bf16.gmra.mxu0 %v1272
    %v1308 = vpop.f32.mrf.mxu0
    %v1309 = vadd.f32 %v1142, %v1308
    %v1310 = vpop.f32.mrf.mxu0
    %v1311 = vadd.f32 %v1144, %v1310
    %v1312 = vpop.f32.mrf.mxu0
    %v1313 = vpop.f32.mrf.mxu0
    %1314 = vdwg.mxu0
    %1315 = vmatprep.subr.bf16.mxu0 0
    %1316 = vmatpush1.bf16.msra.mxu0 0
    %1317 = vmatprep.subr.bf16.mxu0 0
    %1318 = vmatpush1.bf16.msra.mxu0 0
    %1319 = vmatprep.subr.bf16.mxu0 0
    %1320 = vmatpush1.bf16.msra.mxu0 0
    %1321 = vmatprep.subr.bf16.mxu0 0
    %1322 = vmatpush1.bf16.msra.mxu0 0
    %1323 = vmatprep.subr.bf16.mxu0 0
    %1324 = vmatpush1.bf16.msra.mxu0 0
    %1325 = vmatprep.subr.bf16.mxu0 0
    %1326 = vmatpush1.bf16.msra.mxu0 0
    %1327 = vmatprep.subr.bf16.mxu0 %v297
    %1328 = vmatpush1.bf16.msra.mxu0 %v296
    %1329 = vmatprep.subr.bf16.mxu0 %v289
    %1330 = vmatpush1.bf16.msra.mxu0 %v288
    %1331 = vmatprep.subr.bf16.mxu0 0
    %1332 = vmatpush2.bf16.msra.mxu0 0
    %1333 = vmatprep.subr.bf16.mxu0 0
    %1334 = vmatpush2.bf16.msra.mxu0 0
    %1335 = vmatprep.subr.bf16.mxu0 0
    %1336 = vmatpush2.bf16.msra.mxu0 0
    %1337 = vmatprep.subr.bf16.mxu0 0
    %1338 = vmatpush2.bf16.msra.mxu0 0
    %1339 = vmatprep.subr.bf16.mxu0 0
    %1340 = vmatpush2.bf16.msra.mxu0 0
    %1341 = vmatprep.subr.bf16.mxu0 0
    %1342 = vmatpush2.bf16.msra.mxu0 0
    %1343 = vmatprep.subr.bf16.mxu0 0
    %1344 = vmatpush2.bf16.msra.mxu0 0
    %1345 = vmatprep.subr.bf16.mxu0 0
    %1346 = vmatpush2.bf16.msra.mxu0 0
    %1347 = vmatprep.mubr.bf16.mxu0 0
    %1348 = vmatmul.mubr.bf16.gmra.mxu0 %v1272
    %v1349 = vpop.f32.mrf.mxu0
    %v1350 = vadd.f32 %v1183, %v1349
    %v1351 = vpop.f32.mrf.mxu0
    %v1352 = vadd.f32 %v1185, %v1351
    %v1353 = vpop.f32.mrf.mxu0
    %v1354 = vpop.f32.mrf.mxu0
    %1355 = vdwg.mxu0
    %1356 = vmatprep.subr.bf16.mxu0 0
    %1357 = vmatpush1.bf16.msra.mxu0 0
    %1358 = vmatprep.subr.bf16.mxu0 0
    %1359 = vmatpush1.bf16.msra.mxu0 0
    %1360 = vmatprep.subr.bf16.mxu0 0
    %1361 = vmatpush1.bf16.msra.mxu0 0
    %1362 = vmatprep.subr.bf16.mxu0 0
    %1363 = vmatpush1.bf16.msra.mxu0 0
    %1364 = vmatprep.subr.bf16.mxu0 0
    %1365 = vmatpush1.bf16.msra.mxu0 0
    %1366 = vmatprep.subr.bf16.mxu0 0
    %1367 = vmatpush1.bf16.msra.mxu0 0
    %1368 = vmatprep.subr.bf16.mxu0 %v299
    %1369 = vmatpush1.bf16.msra.mxu0 %v298
    %1370 = vmatprep.subr.bf16.mxu0 %v291
    %1371 = vmatpush1.bf16.msra.mxu0 %v290
    %1372 = vmatprep.subr.bf16.mxu0 0
    %1373 = vmatpush2.bf16.msra.mxu0 0
    %1374 = vmatprep.subr.bf16.mxu0 0
    %1375 = vmatpush2.bf16.msra.mxu0 0
    %1376 = vmatprep.subr.bf16.mxu0 0
    %1377 = vmatpush2.bf16.msra.mxu0 0
    %1378 = vmatprep.subr.bf16.mxu0 0
    %1379 = vmatpush2.bf16.msra.mxu0 0
    %1380 = vmatprep.subr.bf16.mxu0 0
    %1381 = vmatpush2.bf16.msra.mxu0 0
    %1382 = vmatprep.subr.bf16.mxu0 0
    %1383 = vmatpush2.bf16.msra.mxu0 0
    %1384 = vmatprep.subr.bf16.mxu0 0
    %1385 = vmatpush2.bf16.msra.mxu0 0
    %1386 = vmatprep.subr.bf16.mxu0 0
    %1387 = vmatpush2.bf16.msra.mxu0 0
    %1388 = vmatprep.mubr.bf16.mxu0 0
    %1389 = vmatmul.mubr.bf16.gmra.mxu0 %v1272
    %v1390 = vpop.f32.mrf.mxu0
    %v1391 = vadd.f32 %v1224, %v1390
    %v1392 = vpop.f32.mrf.mxu0
    %v1393 = vadd.f32 %v1226, %v1392
    %v1394 = vpop.f32.mrf.mxu0
    %v1395 = vpop.f32.mrf.mxu0
    %1396 = vdwg.mxu0
    %1397 = vmatprep.subr.bf16.mxu0 0
    %1398 = vmatpush1.bf16.msra.mxu0 0
    %1399 = vmatprep.subr.bf16.mxu0 0
    %1400 = vmatpush1.bf16.msra.mxu0 0
    %1401 = vmatprep.subr.bf16.mxu0 0
    %1402 = vmatpush1.bf16.msra.mxu0 0
    %1403 = vmatprep.subr.bf16.mxu0 0
    %1404 = vmatpush1.bf16.msra.mxu0 0
    %1405 = vmatprep.subr.bf16.mxu0 0
    %1406 = vmatpush1.bf16.msra.mxu0 0
    %1407 = vmatprep.subr.bf16.mxu0 0
    %1408 = vmatpush1.bf16.msra.mxu0 0
    %1409 = vmatprep.subr.bf16.mxu0 %v301
    %1410 = vmatpush1.bf16.msra.mxu0 %v300
    %1411 = vmatprep.subr.bf16.mxu0 %v293
    %1412 = vmatpush1.bf16.msra.mxu0 %v292
    %1413 = vmatprep.subr.bf16.mxu0 0
    %1414 = vmatpush2.bf16.msra.mxu0 0
    %1415 = vmatprep.subr.bf16.mxu0 0
    %1416 = vmatpush2.bf16.msra.mxu0 0
    %1417 = vmatprep.subr.bf16.mxu0 0
    %1418 = vmatpush2.bf16.msra.mxu0 0
    %1419 = vmatprep.subr.bf16.mxu0 0
    %1420 = vmatpush2.bf16.msra.mxu0 0
    %1421 = vmatprep.subr.bf16.mxu0 0
    %1422 = vmatpush2.bf16.msra.mxu0 0
    %1423 = vmatprep.subr.bf16.mxu0 0
    %1424 = vmatpush2.bf16.msra.mxu0 0
    %1425 = vmatprep.subr.bf16.mxu0 0
    %1426 = vmatpush2.bf16.msra.mxu0 0
    %1427 = vmatprep.subr.bf16.mxu0 0
    %1428 = vmatpush2.bf16.msra.mxu0 0
    %1429 = vmatprep.mubr.bf16.mxu0 0
    %1430 = vmatmul.mubr.bf16.gmra.mxu0 %v1272
    %v1431 = vpop.f32.mrf.mxu0
    %v1432 = vadd.f32 %v1265, %v1431
    %v1433 = vpop.f32.mrf.mxu0
    %v1434 = vadd.f32 %v1267, %v1433
    %v1435 = vpop.f32.mrf.mxu0
    %v1436 = vpop.f32.mrf.mxu0
    %1437 = vdwg.mxu0
    %v1438 = vmul.f32 %v1309, %v1087
    %v1439 = vmul.f32 %v1311, %v1088
    %v1440 = vmul.f32 %v1350, %v1089
    %v1441 = vmul.f32 %v1352, %v1090
    %v1442 = vmul.f32 %v1391, %v1091
    %v1443 = vmul.f32 %v1393, %v1092
    %v1444 = vmul.f32 %v1432, %v1093
    %v1445 = vmul.f32 %v1434, %v1094
    %v1446 = vpack.c.bf16 %v1438, %v1438
    %v1447 = vpack.c.bf16 %v1439, %v1439
    %v1448 = vpack.c.bf16 %v1440, %v1440
    %v1449 = vpack.c.bf16 %v1441, %v1441
    %v1450 = vpack.c.bf16 %v1442, %v1442
    %v1451 = vpack.c.bf16 %v1443, %v1443
    %v1452 = vpack.c.bf16 %v1444, %v1444
    %v1453 = vpack.c.bf16 %v1445, %v1445
    %v1454 = vunpack.c.l.bf16 %v1446
    %v1455 = vunpack.c.l.bf16 %v1447
    %v1456 = vunpack.c.l.bf16 %v1448
    %v1457 = vunpack.c.l.bf16 %v1449
    %v1458 = vunpack.c.l.bf16 %v1450
    %v1459 = vunpack.c.l.bf16 %v1451
    %v1460 = vunpack.c.l.bf16 %v1452
    %v1461 = vunpack.c.l.bf16 %v1453
    %v1462 = vsub.f32 %v1438, %v1454
    %v1463 = vsub.f32 %v1439, %v1455
    %v1464 = vsub.f32 %v1440, %v1456
    %v1465 = vsub.f32 %v1441, %v1457
    %v1466 = vsub.f32 %v1442, %v1458
    %v1467 = vsub.f32 %v1443, %v1459
    %v1468 = vsub.f32 %v1444, %v1460
    %v1469 = vsub.f32 %v1445, %v1461
    %v1470 = vpack.c.bf16 %v1462, %v1462
    %v1471 = vpack.c.bf16 %v1463, %v1463
    %v1472 = vpack.c.bf16 %v1464, %v1464
    %v1473 = vpack.c.bf16 %v1465, %v1465
    %v1474 = vpack.c.bf16 %v1466, %v1466
    %v1475 = vpack.c.bf16 %v1467, %v1467
    %v1476 = vpack.c.bf16 %v1468, %v1468
    %v1477 = vpack.c.bf16 %v1469, %v1469
    %v1606 = vunpack.c.l.b16 %v94
    %v1607 = vunpack.c.l.b16 %v95
    %v1608 = vunpack.c.l.b16 %v96
    %v1609 = vunpack.c.l.b16 %v97
    %v1610 = vunpack.c.l.b16 %v98
    %v1611 = vunpack.c.l.b16 %v99
    %v1612 = vunpack.c.l.b16 %v100
    %v1613 = vunpack.c.l.b16 %v101
    %v1614 = vunpack.c.l.b16 %v102
    %v1615 = vunpack.c.l.b16 %v103
    %v1616 = vunpack.c.l.b16 %v104
    %v1617 = vunpack.c.l.b16 %v105
    %v1618 = vunpack.c.l.b16 %v106
    %v1619 = vunpack.c.l.b16 %v107
    %v1620 = vunpack.c.l.b16 %v108
    %v1621 = vunpack.c.l.b16 %v109
    %v1622 = vunpack.c.l.b16 %v110
    %v1623 = vunpack.c.l.b16 %v111
    %v1624 = vunpack.c.l.b16 %v112
    %v1625 = vunpack.c.l.b16 %v113
    %v1626 = vunpack.c.l.b16 %v114
    %v1627 = vunpack.c.l.b16 %v115
    %v1628 = vunpack.c.l.b16 %v116
    %v1629 = vunpack.c.l.b16 %v117
    %v1630 = vunpack.c.l.b16 %v118
    %v1631 = vunpack.c.l.b16 %v119
    %v1632 = vunpack.c.l.b16 %v120
    %v1633 = vunpack.c.l.b16 %v121
    %v1634 = vunpack.c.l.b16 %v122
    %v1635 = vunpack.c.l.b16 %v123
    %v1636 = vunpack.c.l.b16 %v124
    %v1637 = vunpack.c.l.b16 %v125
    %v1638 = vunpack.c.l.b16 %v126
    %v1639 = vunpack.c.l.b16 %v127
    %v1640 = vunpack.c.l.b16 %v128
    %v1641 = vunpack.c.l.b16 %v129
    %v1642 = vunpack.c.l.b16 %v130
    %v1643 = vunpack.c.l.b16 %v131
    %v1644 = vunpack.c.l.b16 %v132
    %v1645 = vunpack.c.l.b16 %v133
    %v1646 = vunpack.c.l.b16 %v134
    %v1647 = vunpack.c.l.b16 %v135
    %v1648 = vunpack.c.l.b16 %v136
    %v1649 = vunpack.c.l.b16 %v137
    %v1650 = vunpack.c.l.b16 %v138
    %v1651 = vunpack.c.l.b16 %v139
    %v1652 = vunpack.c.l.b16 %v140
    %v1653 = vunpack.c.l.b16 %v141
    %v1654 = vunpack.c.l.b16 %v142
    %v1655 = vunpack.c.l.b16 %v143
    %v1656 = vunpack.c.l.b16 %v144
    %v1657 = vunpack.c.l.b16 %v145
    %v1658 = vunpack.c.l.b16 %v146
    %v1659 = vunpack.c.l.b16 %v147
    %v1660 = vunpack.c.l.b16 %v148
    %v1661 = vunpack.c.l.b16 %v149
    %v1662 = vunpack.c.l.b16 %v150
    %v1663 = vunpack.c.l.b16 %v151
    %v1664 = vunpack.c.l.b16 %v152
    %v1665 = vunpack.c.l.b16 %v153
    %v1666 = vunpack.c.l.b16 %v154
    %v1667 = vunpack.c.l.b16 %v155
    %v1668 = vunpack.c.l.b16 %v156
    %v1669 = vunpack.c.l.b16 %v157
    %v1670 = vunpack.c.l.b16 %v158
    %v1671 = vunpack.c.l.b16 %v159
    %v1672 = vunpack.c.l.b16 %v160
    %v1673 = vunpack.c.l.b16 %v161
    %v1674 = vunpack.c.l.b16 %v162
    %v1675 = vunpack.c.l.b16 %v163
    %v1676 = vunpack.c.l.b16 %v164
    %v1677 = vunpack.c.l.b16 %v165
    %v1678 = vunpack.c.l.b16 %v166
    %v1679 = vunpack.c.l.b16 %v167
    %v1680 = vunpack.c.l.b16 %v168
    %v1681 = vunpack.c.l.b16 %v169
    %v1682 = vunpack.c.l.b16 %v170
    %v1683 = vunpack.c.l.b16 %v171
    %v1684 = vunpack.c.l.b16 %v172
    %v1685 = vunpack.c.l.b16 %v173
    %v1686 = vunpack.c.l.b16 %v174
    %v1687 = vunpack.c.l.b16 %v175
    %v1688 = vunpack.c.l.b16 %v176
    %v1689 = vunpack.c.l.b16 %v177
    %v1690 = vunpack.c.l.b16 %v178
    %v1691 = vunpack.c.l.b16 %v179
    %v1692 = vunpack.c.l.b16 %v180
    %v1693 = vunpack.c.l.b16 %v181
    %v1694 = vunpack.c.l.b16 %v182
    %v1695 = vunpack.c.l.b16 %v183
    %v1696 = vunpack.c.l.b16 %v184
    %v1697 = vunpack.c.l.b16 %v185
    %v1698 = vunpack.c.l.b16 %v186
    %v1699 = vunpack.c.l.b16 %v187
    %v1700 = vunpack.c.l.b16 %v188
    %v1701 = vunpack.c.l.b16 %v189
    %v1702 = vunpack.c.l.b16 %v190
    %v1703 = vunpack.c.l.b16 %v191
    %v1704 = vunpack.c.l.b16 %v192
    %v1705 = vunpack.c.l.b16 %v193
    %v1706 = vunpack.c.l.b16 %v194
    %v1707 = vunpack.c.l.b16 %v195
    %v1708 = vunpack.c.l.b16 %v196
    %v1709 = vunpack.c.l.b16 %v197
    %v1710 = vunpack.c.l.b16 %v198
    %v1711 = vunpack.c.l.b16 %v199
    %v1712 = vunpack.c.l.b16 %v200
    %v1713 = vunpack.c.l.b16 %v201
    %v1714 = vunpack.c.l.b16 %v202
    %v1715 = vunpack.c.l.b16 %v203
    %v1716 = vunpack.c.l.b16 %v204
    %v1717 = vunpack.c.l.b16 %v205
    %v1718 = vunpack.c.l.b16 %v206
    %v1719 = vunpack.c.l.b16 %v207
    %v1720 = vunpack.c.l.b16 %v208
    %v1721 = vunpack.c.l.b16 %v209
    %v1722 = vunpack.c.l.b16 %v210
    %v1723 = vunpack.c.l.b16 %v211
    %v1724 = vunpack.c.l.b16 %v212
    %v1725 = vunpack.c.l.b16 %v213
    %v1726 = vunpack.c.l.b16 %v214
    %v1727 = vunpack.c.l.b16 %v215
    %v1728 = vunpack.c.l.b16 %v216
    %v1729 = vunpack.c.l.b16 %v217
    %v1730 = vunpack.c.l.b16 %v218
    %v1731 = vunpack.c.l.b16 %v219
    %v1732 = vunpack.c.l.b16 %v220
    %v1733 = vunpack.c.l.b16 %v221
    %v1734 = vpack.c.b16 %v1607, %v1606
    %v1735 = vpack.c.b16 %v1609, %v1608
    %v1736 = vpack.c.b16 %v1611, %v1610
    %v1737 = vpack.c.b16 %v1613, %v1612
    %v1738 = vpack.c.b16 %v1615, %v1614
    %v1739 = vpack.c.b16 %v1617, %v1616
    %v1740 = vpack.c.b16 %v1619, %v1618
    %v1741 = vpack.c.b16 %v1621, %v1620
    %v1742 = vpack.c.b16 %v1623, %v1622
    %v1743 = vpack.c.b16 %v1625, %v1624
    %v1744 = vpack.c.b16 %v1627, %v1626
    %v1745 = vpack.c.b16 %v1629, %v1628
    %v1746 = vpack.c.b16 %v1631, %v1630
    %v1747 = vpack.c.b16 %v1633, %v1632
    %v1748 = vpack.c.b16 %v1635, %v1634
    %v1749 = vpack.c.b16 %v1637, %v1636
    %v1750 = vpack.c.b16 %v1639, %v1638
    %v1751 = vpack.c.b16 %v1641, %v1640
    %v1752 = vpack.c.b16 %v1643, %v1642
    %v1753 = vpack.c.b16 %v1645, %v1644
    %v1754 = vpack.c.b16 %v1647, %v1646
    %v1755 = vpack.c.b16 %v1649, %v1648
    %v1756 = vpack.c.b16 %v1651, %v1650
    %v1757 = vpack.c.b16 %v1653, %v1652
    %v1758 = vpack.c.b16 %v1655, %v1654
    %v1759 = vpack.c.b16 %v1657, %v1656
    %v1760 = vpack.c.b16 %v1659, %v1658
    %v1761 = vpack.c.b16 %v1661, %v1660
    %v1762 = vpack.c.b16 %v1663, %v1662
    %v1763 = vpack.c.b16 %v1665, %v1664
    %v1764 = vpack.c.b16 %v1667, %v1666
    %v1765 = vpack.c.b16 %v1669, %v1668
    %v1766 = vpack.c.b16 %v1671, %v1670
    %v1767 = vpack.c.b16 %v1673, %v1672
    %v1768 = vpack.c.b16 %v1675, %v1674
    %v1769 = vpack.c.b16 %v1677, %v1676
    %v1770 = vpack.c.b16 %v1679, %v1678
    %v1771 = vpack.c.b16 %v1681, %v1680
    %v1772 = vpack.c.b16 %v1683, %v1682
    %v1773 = vpack.c.b16 %v1685, %v1684
    %v1774 = vpack.c.b16 %v1687, %v1686
    %v1775 = vpack.c.b16 %v1689, %v1688
    %v1776 = vpack.c.b16 %v1691, %v1690
    %v1777 = vpack.c.b16 %v1693, %v1692
    %v1778 = vpack.c.b16 %v1695, %v1694
    %v1779 = vpack.c.b16 %v1697, %v1696
    %v1780 = vpack.c.b16 %v1699, %v1698
    %v1781 = vpack.c.b16 %v1701, %v1700
    %v1782 = vpack.c.b16 %v1703, %v1702
    %v1783 = vpack.c.b16 %v1705, %v1704
    %v1784 = vpack.c.b16 %v1707, %v1706
    %v1785 = vpack.c.b16 %v1709, %v1708
    %v1786 = vpack.c.b16 %v1711, %v1710
    %v1787 = vpack.c.b16 %v1713, %v1712
    %v1788 = vpack.c.b16 %v1715, %v1714
    %v1789 = vpack.c.b16 %v1717, %v1716
    %v1790 = vpack.c.b16 %v1719, %v1718
    %v1791 = vpack.c.b16 %v1721, %v1720
    %v1792 = vpack.c.b16 %v1723, %v1722
    %v1793 = vpack.c.b16 %v1725, %v1724
    %v1794 = vpack.c.b16 %v1727, %v1726
    %v1795 = vpack.c.b16 %v1729, %v1728
    %v1796 = vpack.c.b16 %v1731, %v1730
    %v1797 = vpack.c.b16 %v1733, %v1732
    %1862 = vmatprep.subr.bf16.mxu0 0
    %1863 = vmatpush1.bf16.msra.mxu0 %v1741
    %1864 = vmatprep.subr.bf16.mxu0 0
    %1865 = vmatpush1.bf16.msra.mxu0 %v1740
    %1866 = vmatprep.subr.bf16.mxu0 0
    %1867 = vmatpush1.bf16.msra.mxu0 %v1739
    %1868 = vmatprep.subr.bf16.mxu0 0
    %1869 = vmatpush1.bf16.msra.mxu0 %v1738
    %1870 = vmatprep.subr.bf16.mxu0 0
    %1871 = vmatpush1.bf16.msra.mxu0 %v1737
    %1872 = vmatprep.subr.bf16.mxu0 0
    %1873 = vmatpush1.bf16.msra.mxu0 %v1736
    %1874 = vmatprep.subr.bf16.mxu0 0
    %1875 = vmatpush1.bf16.msra.mxu0 %v1735
    %1876 = vmatprep.subr.bf16.mxu0 0
    %1877 = vmatpush1.bf16.msra.mxu0 %v1734
    %1878 = vmatprep.subr.bf16.mxu0 0
    %1879 = vmatpush2.bf16.msra.mxu0 %v1749
    %1880 = vmatprep.subr.bf16.mxu0 0
    %1881 = vmatpush2.bf16.msra.mxu0 %v1748
    %1882 = vmatprep.subr.bf16.mxu0 0
    %1883 = vmatpush2.bf16.msra.mxu0 %v1747
    %1884 = vmatprep.subr.bf16.mxu0 0
    %1885 = vmatpush2.bf16.msra.mxu0 %v1746
    %1886 = vmatprep.subr.bf16.mxu0 0
    %1887 = vmatpush2.bf16.msra.mxu0 %v1745
    %1888 = vmatprep.subr.bf16.mxu0 0
    %1889 = vmatpush2.bf16.msra.mxu0 %v1744
    %1890 = vmatprep.subr.bf16.mxu0 0
    %1891 = vmatpush2.bf16.msra.mxu0 %v1743
    %1892 = vmatprep.subr.bf16.mxu0 0
    %1893 = vmatpush2.bf16.msra.mxu0 %v1742
    %1894 = vmatprep.mubr.bf16.mxu0 %v1471
    %1895 = vmatmul.mubr.bf16.gmra.mxu0 %v1470
    %v1896 = vpop.f32.mrf.mxu0
    %v1897 = vadd.f32 0.0, %v1896
    %v1898 = vpop.f32.mrf.mxu0
    %v1899 = vpop.f32.mrf.mxu0
    %v1900 = vpop.f32.mrf.mxu0
    %1901 = vdwg.mxu0
    %1902 = vmatprep.subr.bf16.mxu0 0
    %1903 = vmatpush1.bf16.msra.mxu0 %v1757
    %1904 = vmatprep.subr.bf16.mxu0 0
    %1905 = vmatpush1.bf16.msra.mxu0 %v1756
    %1906 = vmatprep.subr.bf16.mxu0 0
    %1907 = vmatpush1.bf16.msra.mxu0 %v1755
    %1908 = vmatprep.subr.bf16.mxu0 0
    %1909 = vmatpush1.bf16.msra.mxu0 %v1754
    %1910 = vmatprep.subr.bf16.mxu0 0
    %1911 = vmatpush1.bf16.msra.mxu0 %v1753
    %1912 = vmatprep.subr.bf16.mxu0 0
    %1913 = vmatpush1.bf16.msra.mxu0 %v1752
    %1914 = vmatprep.subr.bf16.mxu0 0
    %1915 = vmatpush1.bf16.msra.mxu0 %v1751
    %1916 = vmatprep.subr.bf16.mxu0 0
    %1917 = vmatpush1.bf16.msra.mxu0 %v1750
    %1918 = vmatprep.subr.bf16.mxu0 0
    %1919 = vmatpush2.bf16.msra.mxu0 %v1765
    %1920 = vmatprep.subr.bf16.mxu0 0
    %1921 = vmatpush2.bf16.msra.mxu0 %v1764
    %1922 = vmatprep.subr.bf16.mxu0 0
    %1923 = vmatpush2.bf16.msra.mxu0 %v1763
    %1924 = vmatprep.subr.bf16.mxu0 0
    %1925 = vmatpush2.bf16.msra.mxu0 %v1762
    %1926 = vmatprep.subr.bf16.mxu0 0
    %1927 = vmatpush2.bf16.msra.mxu0 %v1761
    %1928 = vmatprep.subr.bf16.mxu0 0
    %1929 = vmatpush2.bf16.msra.mxu0 %v1760
    %1930 = vmatprep.subr.bf16.mxu0 0
    %1931 = vmatpush2.bf16.msra.mxu0 %v1759
    %1932 = vmatprep.subr.bf16.mxu0 0
    %1933 = vmatpush2.bf16.msra.mxu0 %v1758
    %1934 = vmatprep.mubr.bf16.mxu0 %v1473
    %1935 = vmatmul.mubr.bf16.gmra.mxu0 %v1472
    %v1936 = vpop.f32.mrf.mxu0
    %v1937 = vadd.f32 %v1897, %v1936
    %v1938 = vpop.f32.mrf.mxu0
    %v1939 = vpop.f32.mrf.mxu0
    %v1940 = vpop.f32.mrf.mxu0
    %1941 = vdwg.mxu0
    %1942 = vmatprep.subr.bf16.mxu0 0
    %1943 = vmatpush1.bf16.msra.mxu0 %v1773
    %1944 = vmatprep.subr.bf16.mxu0 0
    %1945 = vmatpush1.bf16.msra.mxu0 %v1772
    %1946 = vmatprep.subr.bf16.mxu0 0
    %1947 = vmatpush1.bf16.msra.mxu0 %v1771
    %1948 = vmatprep.subr.bf16.mxu0 0
    %1949 = vmatpush1.bf16.msra.mxu0 %v1770
    %1950 = vmatprep.subr.bf16.mxu0 0
    %1951 = vmatpush1.bf16.msra.mxu0 %v1769
    %1952 = vmatprep.subr.bf16.mxu0 0
    %1953 = vmatpush1.bf16.msra.mxu0 %v1768
    %1954 = vmatprep.subr.bf16.mxu0 0
    %1955 = vmatpush1.bf16.msra.mxu0 %v1767
    %1956 = vmatprep.subr.bf16.mxu0 0
    %1957 = vmatpush1.bf16.msra.mxu0 %v1766
    %1958 = vmatprep.subr.bf16.mxu0 0
    %1959 = vmatpush2.bf16.msra.mxu0 %v1781
    %1960 = vmatprep.subr.bf16.mxu0 0
    %1961 = vmatpush2.bf16.msra.mxu0 %v1780
    %1962 = vmatprep.subr.bf16.mxu0 0
    %1963 = vmatpush2.bf16.msra.mxu0 %v1779
    %1964 = vmatprep.subr.bf16.mxu0 0
    %1965 = vmatpush2.bf16.msra.mxu0 %v1778
    %1966 = vmatprep.subr.bf16.mxu0 0
    %1967 = vmatpush2.bf16.msra.mxu0 %v1777
    %1968 = vmatprep.subr.bf16.mxu0 0
    %1969 = vmatpush2.bf16.msra.mxu0 %v1776
    %1970 = vmatprep.subr.bf16.mxu0 0
    %1971 = vmatpush2.bf16.msra.mxu0 %v1775
    %1972 = vmatprep.subr.bf16.mxu0 0
    %1973 = vmatpush2.bf16.msra.mxu0 %v1774
    %1974 = vmatprep.mubr.bf16.mxu0 %v1475
    %1975 = vmatmul.mubr.bf16.gmra.mxu0 %v1474
    %v1976 = vpop.f32.mrf.mxu0
    %v1977 = vadd.f32 %v1937, %v1976
    %v1978 = vpop.f32.mrf.mxu0
    %v1979 = vpop.f32.mrf.mxu0
    %v1980 = vpop.f32.mrf.mxu0
    %1981 = vdwg.mxu0
    %1982 = vmatprep.subr.bf16.mxu0 0
    %1983 = vmatpush1.bf16.msra.mxu0 %v1789
    %1984 = vmatprep.subr.bf16.mxu0 0
    %1985 = vmatpush1.bf16.msra.mxu0 %v1788
    %1986 = vmatprep.subr.bf16.mxu0 0
    %1987 = vmatpush1.bf16.msra.mxu0 %v1787
    %1988 = vmatprep.subr.bf16.mxu0 0
    %1989 = vmatpush1.bf16.msra.mxu0 %v1786
    %1990 = vmatprep.subr.bf16.mxu0 0
    %1991 = vmatpush1.bf16.msra.mxu0 %v1785
    %1992 = vmatprep.subr.bf16.mxu0 0
    %1993 = vmatpush1.bf16.msra.mxu0 %v1784
    %1994 = vmatprep.subr.bf16.mxu0 0
    %1995 = vmatpush1.bf16.msra.mxu0 %v1783
    %1996 = vmatprep.subr.bf16.mxu0 0
    %1997 = vmatpush1.bf16.msra.mxu0 %v1782
    %1998 = vmatprep.subr.bf16.mxu0 0
    %1999 = vmatpush2.bf16.msra.mxu0 %v1797
    %2000 = vmatprep.subr.bf16.mxu0 0
    %2001 = vmatpush2.bf16.msra.mxu0 %v1796
    %2002 = vmatprep.subr.bf16.mxu0 0
    %2003 = vmatpush2.bf16.msra.mxu0 %v1795
    %2004 = vmatprep.subr.bf16.mxu0 0
    %2005 = vmatpush2.bf16.msra.mxu0 %v1794
    %2006 = vmatprep.subr.bf16.mxu0 0
    %2007 = vmatpush2.bf16.msra.mxu0 %v1793
    %2008 = vmatprep.subr.bf16.mxu0 0
    %2009 = vmatpush2.bf16.msra.mxu0 %v1792
    %2010 = vmatprep.subr.bf16.mxu0 0
    %2011 = vmatpush2.bf16.msra.mxu0 %v1791
    %2012 = vmatprep.subr.bf16.mxu0 0
    %2013 = vmatpush2.bf16.msra.mxu0 %v1790
    %2014 = vmatprep.mubr.bf16.mxu0 %v1477
    %2015 = vmatmul.mubr.bf16.gmra.mxu0 %v1476
    %v2016 = vpop.f32.mrf.mxu0
    %v2017 = vadd.f32 %v1977, %v2016
    %v2018 = vpop.f32.mrf.mxu0
    %v2019 = vpop.f32.mrf.mxu0
    %v2020 = vpop.f32.mrf.mxu0
    %2021 = vdwg.mxu0
    %2022 = vmatprep.subr.bf16.mxu0 0
    %2023 = vmatpush1.bf16.msra.mxu0 %v1741
    %2024 = vmatprep.subr.bf16.mxu0 0
    %2025 = vmatpush1.bf16.msra.mxu0 %v1740
    %2026 = vmatprep.subr.bf16.mxu0 0
    %2027 = vmatpush1.bf16.msra.mxu0 %v1739
    %2028 = vmatprep.subr.bf16.mxu0 0
    %2029 = vmatpush1.bf16.msra.mxu0 %v1738
    %2030 = vmatprep.subr.bf16.mxu0 0
    %2031 = vmatpush1.bf16.msra.mxu0 %v1737
    %2032 = vmatprep.subr.bf16.mxu0 0
    %2033 = vmatpush1.bf16.msra.mxu0 %v1736
    %2034 = vmatprep.subr.bf16.mxu0 0
    %2035 = vmatpush1.bf16.msra.mxu0 %v1735
    %2036 = vmatprep.subr.bf16.mxu0 0
    %2037 = vmatpush1.bf16.msra.mxu0 %v1734
    %2038 = vmatprep.subr.bf16.mxu0 0
    %2039 = vmatpush2.bf16.msra.mxu0 %v1749
    %2040 = vmatprep.subr.bf16.mxu0 0
    %2041 = vmatpush2.bf16.msra.mxu0 %v1748
    %2042 = vmatprep.subr.bf16.mxu0 0
    %2043 = vmatpush2.bf16.msra.mxu0 %v1747
    %2044 = vmatprep.subr.bf16.mxu0 0
    %2045 = vmatpush2.bf16.msra.mxu0 %v1746
    %2046 = vmatprep.subr.bf16.mxu0 0
    %2047 = vmatpush2.bf16.msra.mxu0 %v1745
    %2048 = vmatprep.subr.bf16.mxu0 0
    %2049 = vmatpush2.bf16.msra.mxu0 %v1744
    %2050 = vmatprep.subr.bf16.mxu0 0
    %2051 = vmatpush2.bf16.msra.mxu0 %v1743
    %2052 = vmatprep.subr.bf16.mxu0 0
    %2053 = vmatpush2.bf16.msra.mxu0 %v1742
    %2054 = vmatprep.mubr.bf16.mxu0 %v1447
    %2055 = vmatmul.mubr.bf16.gmra.mxu0 %v1446
    %v2056 = vpop.f32.mrf.mxu0
    %v2057 = vadd.f32 %v2017, %v2056
    %v2058 = vpop.f32.mrf.mxu0
    %v2059 = vpop.f32.mrf.mxu0
    %v2060 = vpop.f32.mrf.mxu0
    %2061 = vdwg.mxu0
    %2062 = vmatprep.subr.bf16.mxu0 0
    %2063 = vmatpush1.bf16.msra.mxu0 %v1757
    %2064 = vmatprep.subr.bf16.mxu0 0
    %2065 = vmatpush1.bf16.msra.mxu0 %v1756
    %2066 = vmatprep.subr.bf16.mxu0 0
    %2067 = vmatpush1.bf16.msra.mxu0 %v1755
    %2068 = vmatprep.subr.bf16.mxu0 0
    %2069 = vmatpush1.bf16.msra.mxu0 %v1754
    %2070 = vmatprep.subr.bf16.mxu0 0
    %2071 = vmatpush1.bf16.msra.mxu0 %v1753
    %2072 = vmatprep.subr.bf16.mxu0 0
    %2073 = vmatpush1.bf16.msra.mxu0 %v1752
    %2074 = vmatprep.subr.bf16.mxu0 0
    %2075 = vmatpush1.bf16.msra.mxu0 %v1751
    %2076 = vmatprep.subr.bf16.mxu0 0
    %2077 = vmatpush1.bf16.msra.mxu0 %v1750
    %2078 = vmatprep.subr.bf16.mxu0 0
    %2079 = vmatpush2.bf16.msra.mxu0 %v1765
    %2080 = vmatprep.subr.bf16.mxu0 0
    %2081 = vmatpush2.bf16.msra.mxu0 %v1764
    %2082 = vmatprep.subr.bf16.mxu0 0
    %2083 = vmatpush2.bf16.msra.mxu0 %v1763
    %2084 = vmatprep.subr.bf16.mxu0 0
    %2085 = vmatpush2.bf16.msra.mxu0 %v1762
    %2086 = vmatprep.subr.bf16.mxu0 0
    %2087 = vmatpush2.bf16.msra.mxu0 %v1761
    %2088 = vmatprep.subr.bf16.mxu0 0
    %2089 = vmatpush2.bf16.msra.mxu0 %v1760
    %2090 = vmatprep.subr.bf16.mxu0 0
    %2091 = vmatpush2.bf16.msra.mxu0 %v1759
    %2092 = vmatprep.subr.bf16.mxu0 0
    %2093 = vmatpush2.bf16.msra.mxu0 %v1758
    %2094 = vmatprep.mubr.bf16.mxu0 %v1449
    %2095 = vmatmul.mubr.bf16.gmra.mxu0 %v1448
    %v2096 = vpop.f32.mrf.mxu0
    %v2097 = vadd.f32 %v2057, %v2096
    %v2098 = vpop.f32.mrf.mxu0
    %v2099 = vpop.f32.mrf.mxu0
    %v2100 = vpop.f32.mrf.mxu0
    %2101 = vdwg.mxu0
    %2102 = vmatprep.subr.bf16.mxu0 0
    %2103 = vmatpush1.bf16.msra.mxu0 %v1773
    %2104 = vmatprep.subr.bf16.mxu0 0
    %2105 = vmatpush1.bf16.msra.mxu0 %v1772
    %2106 = vmatprep.subr.bf16.mxu0 0
    %2107 = vmatpush1.bf16.msra.mxu0 %v1771
    %2108 = vmatprep.subr.bf16.mxu0 0
    %2109 = vmatpush1.bf16.msra.mxu0 %v1770
    %2110 = vmatprep.subr.bf16.mxu0 0
    %2111 = vmatpush1.bf16.msra.mxu0 %v1769
    %2112 = vmatprep.subr.bf16.mxu0 0
    %2113 = vmatpush1.bf16.msra.mxu0 %v1768
    %2114 = vmatprep.subr.bf16.mxu0 0
    %2115 = vmatpush1.bf16.msra.mxu0 %v1767
    %2116 = vmatprep.subr.bf16.mxu0 0
    %2117 = vmatpush1.bf16.msra.mxu0 %v1766
    %2118 = vmatprep.subr.bf16.mxu0 0
    %2119 = vmatpush2.bf16.msra.mxu0 %v1781
    %2120 = vmatprep.subr.bf16.mxu0 0
    %2121 = vmatpush2.bf16.msra.mxu0 %v1780
    %2122 = vmatprep.subr.bf16.mxu0 0
    %2123 = vmatpush2.bf16.msra.mxu0 %v1779
    %2124 = vmatprep.subr.bf16.mxu0 0
    %2125 = vmatpush2.bf16.msra.mxu0 %v1778
    %2126 = vmatprep.subr.bf16.mxu0 0
    %2127 = vmatpush2.bf16.msra.mxu0 %v1777
    %2128 = vmatprep.subr.bf16.mxu0 0
    %2129 = vmatpush2.bf16.msra.mxu0 %v1776
    %2130 = vmatprep.subr.bf16.mxu0 0
    %2131 = vmatpush2.bf16.msra.mxu0 %v1775
    %2132 = vmatprep.subr.bf16.mxu0 0
    %2133 = vmatpush2.bf16.msra.mxu0 %v1774
    %2134 = vmatprep.mubr.bf16.mxu0 %v1451
    %2135 = vmatmul.mubr.bf16.gmra.mxu0 %v1450
    %v2136 = vpop.f32.mrf.mxu0
    %v2137 = vadd.f32 %v2097, %v2136
    %v2138 = vpop.f32.mrf.mxu0
    %v2139 = vpop.f32.mrf.mxu0
    %v2140 = vpop.f32.mrf.mxu0
    %2141 = vdwg.mxu0
    %2142 = vmatprep.subr.bf16.mxu0 0
    %2143 = vmatpush1.bf16.msra.mxu0 %v1789
    %2144 = vmatprep.subr.bf16.mxu0 0
    %2145 = vmatpush1.bf16.msra.mxu0 %v1788
    %2146 = vmatprep.subr.bf16.mxu0 0
    %2147 = vmatpush1.bf16.msra.mxu0 %v1787
    %2148 = vmatprep.subr.bf16.mxu0 0
    %2149 = vmatpush1.bf16.msra.mxu0 %v1786
    %2150 = vmatprep.subr.bf16.mxu0 0
    %2151 = vmatpush1.bf16.msra.mxu0 %v1785
    %2152 = vmatprep.subr.bf16.mxu0 0
    %2153 = vmatpush1.bf16.msra.mxu0 %v1784
    %2154 = vmatprep.subr.bf16.mxu0 0
    %2155 = vmatpush1.bf16.msra.mxu0 %v1783
    %2156 = vmatprep.subr.bf16.mxu0 0
    %2157 = vmatpush1.bf16.msra.mxu0 %v1782
    %2158 = vmatprep.subr.bf16.mxu0 0
    %2159 = vmatpush2.bf16.msra.mxu0 %v1797
    %2160 = vmatprep.subr.bf16.mxu0 0
    %2161 = vmatpush2.bf16.msra.mxu0 %v1796
    %2162 = vmatprep.subr.bf16.mxu0 0
    %2163 = vmatpush2.bf16.msra.mxu0 %v1795
    %2164 = vmatprep.subr.bf16.mxu0 0
    %2165 = vmatpush2.bf16.msra.mxu0 %v1794
    %2166 = vmatprep.subr.bf16.mxu0 0
    %2167 = vmatpush2.bf16.msra.mxu0 %v1793
    %2168 = vmatprep.subr.bf16.mxu0 0
    %2169 = vmatpush2.bf16.msra.mxu0 %v1792
    %2170 = vmatprep.subr.bf16.mxu0 0
    %2171 = vmatpush2.bf16.msra.mxu0 %v1791
    %2172 = vmatprep.subr.bf16.mxu0 0
    %2173 = vmatpush2.bf16.msra.mxu0 %v1790
    %2174 = vmatprep.mubr.bf16.mxu0 %v1453
    %2175 = vmatmul.mubr.bf16.gmra.mxu0 %v1452
    %v2176 = vpop.f32.mrf.mxu0
    %v2177 = vadd.f32 %v2137, %v2176
    %v2178 = vpop.f32.mrf.mxu0
    %v2179 = vpop.f32.mrf.mxu0
    %v2180 = vpop.f32.mrf.mxu0
    %2181 = vdwg.mxu0
    %v2182 = vrcp.pop %v1099
    %v2183 = vmul.f32 %v2177, %v2182
    %2184 = vst.msk [vmem:[#allocation7] sm:$0xff] %vm318, %v2183
    %2185 = vst [vmem:[#allocation8] sm:$0xff] %v1087
    %2186 = vst [vmem:[#allocation8 + $0x8] sm:$0xff] %v1088
    %2187 = vst [vmem:[#allocation8 + $0x10] sm:$0xff] %v1089
    %2188 = vst [vmem:[#allocation8 + $0x18] sm:$0xff] %v1090
    %2189 = vst [vmem:[#allocation8 + $0x20] sm:$0xff] %v1091
    %2190 = vst [vmem:[#allocation8 + $0x28] sm:$0xff] %v1092
    %2191 = vst [vmem:[#allocation8 + $0x30] sm:$0xff] %v1093
    %2192 = vst [vmem:[#allocation8 + $0x38] sm:$0xff] %v1094
    %2193 = vst.msk [vmem:[#allocation10] sm:$0xff] %vm318, %v233
    // Predicated region
    $region42: #{tpu_custom_call.1} parent=1 // pred_check
      _
    $region43: #{tpu_custom_call.1} parent=1 // pred_check_branch
      %2195 = sbr.rel (0) target = $region45
    $region44: #{tpu_custom_call.1} parent=1 // pred_region
      %s2197 = ssub.s32 128, 128
      %2198 = vsyncadd [#allocation4], %s2197
      %s2200 = sshll.u32 [#allocation7], 4
      %s2201 = int_to_ptr.vmem [resolvable:$true] %s2200
      %2203 = dma.vmem_to_hbm [thread:$0]  %s2201, 128, %s8, [#allocation4]
    $region45: #{tpu_custom_call.1} parent=1 // pred_fallthru
      _
    // Predicated region
    $region46: #{tpu_custom_call.1} parent=1 // pred_check
      _
    $region47: #{tpu_custom_call.1} parent=1 // pred_check_branch
      %2205 = sbr.rel (0) target = $region49
    $region48: #{tpu_custom_call.1} parent=1 // pred_region
      %s2207 = ssub.s32 1024, 1024
      %2208 = vsyncadd [#allocation9], %s2207
      %s2210 = sshll.u32 [#allocation8], 4
      %s2211 = int_to_ptr.vmem [resolvable:$true] %s2210
      %2213 = dma.vmem_to_hbm [thread:$0]  %s2211, 1024, %s9, [#allocation9]
    $region49: #{tpu_custom_call.1} parent=1 // pred_fallthru
      _
    // Predicated region
    $region50: #{tpu_custom_call.1} parent=1 // pred_check
      _
    $region51: #{tpu_custom_call.1} parent=1 // pred_check_branch
      %2215 = sbr.rel (0) target = $region53
    $region52: #{tpu_custom_call.1} parent=1 // pred_region
      %s2217 = ssub.s32 128, 128
      %2218 = vsyncadd [#allocation9], %s2217
      %s2220 = sshll.u32 [#allocation10], 4
      %s2221 = int_to_ptr.vmem [resolvable:$true] %s2220
      %2223 = dma.vmem_to_hbm [thread:$0]  %s2221, 128, %s10, [#allocation9]
    $region53: #{tpu_custom_call.1} parent=1 // pred_fallthru
      _
    // Predicated region
    $region54: #{tpu_custom_call.1} parent=1 // pred_check
      _
    $region55: #{tpu_custom_call.1} parent=1 // pred_check_branch
      %2225 = sbr.rel (0) target = $region57
    $region56: #{tpu_custom_call.1} parent=1 // pred_region
      %2226 = dma.done [#allocation4], 128
    $region57: #{tpu_custom_call.1} parent=1 // pred_fallthru
      _
    // Predicated region
    $region58: #{tpu_custom_call.1} parent=1 // pred_check
      _
    $region59: #{tpu_custom_call.1} parent=1 // pred_check_branch
      %2228 = sbr.rel (0) target = $region61
    $region60: #{tpu_custom_call.1} parent=1 // pred_region
      %2229 = dma.done [#allocation9], 1024
    $region61: #{tpu_custom_call.1} parent=1 // pred_fallthru
      _
    // Predicated region
    $region62: #{tpu_custom_call.1} parent=1 // pred_check
      _
    $region63: #{tpu_custom_call.1} parent=1 // pred_check_branch
      %2231 = sbr.rel (0) target = $region65
    $region64: #{tpu_custom_call.1} parent=1 // pred_region
      %2232 = dma.done [#allocation9], 128
    $region65: #{tpu_custom_call.1} parent=1 // pred_fallthru
      _
    %2233 = vsyncpa [#allocation3], 1
    %2234 = vsyncpa [#allocation6], 1
    %2235 = vsyncpa [#allocation4], 1
    %2236 = vsyncpa [#allocation9], 1

</llo_original>
